<compile_context>
chip_gen: v7x
topology: tpu7x:2x2x1
jax: 0.10.0
libtpu: 0.0.40
codegen_flags: <defaults>
</compile_context>

<pallas_src>
import jax
import jax.numpy as jnp
from jax.experimental import pallas as pl
from jax.experimental.pallas import tpu as pltpu

LAYERS_TO_USE = (-1, -2, -3, -4)
LAYER_WEIGHTS = {-1: 0.5, -2: 0.25, -3: 0.15, -4: 0.1}


def _semantic_loss_kernel(w_ref, mask_o_ref, mask_r_ref, hid_o_ref, hid_r_ref,
                          out_ref, sum_o_ref, sum_r_ref):
    """Grid = (L, num_seq_tiles).

    Accumulates MXU masked-pooled sums over sequence tiles into f32 VMEM
    scratch; finalizes the per-layer weighted loss on the last sequence tile.
    """
    l = pl.program_id(0)
    s = pl.program_id(1)
    num_s = pl.num_programs(1)

    @pl.when(s == 0)
    def _():
        sum_o_ref[...] = jnp.zeros_like(sum_o_ref)
        sum_r_ref[...] = jnp.zeros_like(sum_r_ref)

    mo = mask_o_ref[...]          # (B, 1, TS)  hidden dtype (pre-cast in wrapper)
    mr = mask_r_ref[...]
    ho = hid_o_ref[0]             # (B, TS, H)  native dtype (bf16 or f32)
    hr = hid_r_ref[0]

    # Batched MXU contraction over the sequence tile: (B,1,TS) x (B,TS,H) -> (B,1,H),
    # accumulating in f32.  bf16 inputs go to the MXU as-is; f32 inputs use the
    # exact (HIGHEST) matmul path so they match the f32 reference.
    prec = (jax.lax.Precision.HIGHEST if ho.dtype == jnp.float32
            else jax.lax.Precision.DEFAULT)
    dnums = (((2,), (1,)), ((0,), (0,)))   # contract seq; batch over B
    sum_o_ref[...] += jax.lax.dot_general(
        mo, ho, dnums, precision=prec, preferred_element_type=jnp.float32)
    sum_r_ref[...] += jax.lax.dot_general(
        mr, hr, dnums, precision=prec, preferred_element_type=jnp.float32)

    @pl.when(s == num_s - 1)
    def _():
        so = sum_o_ref[...]                          # (B, 1, H) f32
        sr = sum_r_ref[...]
        # The mean-pool division by the (clamped) mask count is a positive
        # per-row scalar that cancels under L2 normalization -> skipped.
        # clamp(norm, 1e-9) == sqrt(clamp(norm**2, 1e-18)).
        eo = so * jax.lax.rsqrt(
            jnp.maximum(jnp.sum(so * so, axis=-1, keepdims=True), 1e-18))
        er = sr * jax.lax.rsqrt(
            jnp.maximum(jnp.sum(sr * sr, axis=-1, keepdims=True), 1e-18))
        # Embeddings are unit-norm (or exactly zero for all-pad rows), so the
        # cosine-similarity eps=1e-8 re-normalization reduces to the dot.
        sim = jnp.sum(eo * er, axis=-1, keepdims=True)            # (B, 1, 1)
        mean_sim = jnp.sum(sim, axis=0, keepdims=True) * (1.0 / sim.shape[0])
        loss_l = w_ref[l] * (1.0 - mean_sim)                      # (1, 1, 1)
        out_ref[...] = jnp.broadcast_to(loss_l, out_ref.shape).astype(out_ref.dtype)


def _round_up(x, m):
    return ((x + m - 1) // m) * m


def _vmem_budgets():
    """(hidden-tile byte budget, vmem_limit_bytes), generation-aware."""
    try:
        cap = int(pltpu.get_tpu_info().vmem_capacity_bytes)
    except Exception:
        cap = 64 * 1024 * 1024          # conservative fallback
    if cap <= 64 * 1024 * 1024:         # v7x-class: 64 MiB physical VMEM
        return 6 * 1024 * 1024, 56 * 1024 * 1024
    return 20 * 1024 * 1024, 100 * 1024 * 1024   # v5e/v6e: 128 MiB physical


def _choose_tiling(B, S, H, itemsize, tile_budget_bytes):
    """Pick (tile_s, padded_S).  One hidden tile is (1, B, tile_s, H); Pallas
    double-buffers both hidden inputs, so VMEM use ~= 4 * tile_bytes.  The
    padded S is always an exact multiple of tile_s (pads carry mask == 0)."""
    bytes_per_row = B * H * itemsize
    s8 = _round_up(S, 8)
    if s8 * bytes_per_row <= tile_budget_bytes:
        return s8, s8                    # whole (padded) sequence per grid step
    # Multi-tile: tile_s multiple of 128 so the (B, 1, tile_s) mask blocks and
    # the hidden blocks satisfy TPU tiling rules at every grid step.
    s128 = _round_up(S, 128)
    cap = max(128, (tile_budget_bytes // bytes_per_row) // 128 * 128)
    num_s = pl.cdiv(s128, cap)
    tile_s = _round_up(pl.cdiv(s128, num_s), 128)
    return tile_s, tile_s * num_s


def semantic_perceptual_loss(mask_orig, mask_recon, hidden_orig, hidden_recon,
                             layer_weights=None, tile_budget_bytes=None):
    """mask_*: (B, S); hidden_*: (L, B, S, H) float32 or bfloat16.
    Returns the scalar weighted semantic loss."""
    L, B, S, H = hidden_orig.shape
    assert hidden_recon.shape == (L, B, S, H)
    assert mask_orig.shape == (B, S) and mask_recon.shape == (B, S)
    dtype = hidden_orig.dtype

    if layer_weights is None:
        layer_weights = jnp.array(
            [LAYER_WEIGHTS.get(-(i + 1), 0.25) for i in range(L)], jnp.float32)
    layer_weights = jnp.asarray(layer_weights, jnp.float32)
    assert layer_weights.shape == (L,)

    budget, vmem_limit = _vmem_budgets()
    if tile_budget_bytes is not None:
        budget = tile_budget_bytes
    tile_s, s_pad = _choose_tiling(B, S, H, dtype.itemsize, budget)
    num_s = s_pad // tile_s

    if s_pad != S:
        # Zero-pad the sequence axis; padded positions carry mask == 0 so the
        # pooled sums (and hence the loss) are unchanged.
        hid_pad = ((0, 0), (0, 0), (0, s_pad - S), (0, 0))
        hidden_orig = jnp.pad(hidden_orig, hid_pad)
        hidden_recon = jnp.pad(hidden_recon, hid_pad)
        m_pad = ((0, 0), (0, s_pad - S))
        mask_orig = jnp.pad(mask_orig, m_pad)
        mask_recon = jnp.pad(mask_recon, m_pad)

    # Pre-cast + pre-shape the masks once: (B, 1, S_pad) in the hidden dtype is
    # the MXU-ready lhs, so the kernel does no per-step cast or relayout.
    mask_o = mask_orig.astype(dtype).reshape(B, 1, s_pad)
    mask_r = mask_recon.astype(dtype).reshape(B, 1, s_pad)

    # Per-layer weighted losses, each written as a lane-dense (1, 8, 128) block.
    out = pl.pallas_call(
        _semantic_loss_kernel,
        out_shape=jax.ShapeDtypeStruct((L, 8, 128), jnp.float32),
        grid_spec=pltpu.PrefetchScalarGridSpec(
            num_scalar_prefetch=0,
            grid=(L, num_s),
            in_specs=[
                # per-layer weights: tiny, fully resident in SMEM
                pl.BlockSpec(memory_space=pltpu.MemorySpace.SMEM),
                # attention masks: tiny (B, 1, tile_s) tiles following the seq axis
                pl.BlockSpec((B, 1, tile_s), lambda l, s: (0, 0, s)),
                pl.BlockSpec((B, 1, tile_s), lambda l, s: (0, 0, s)),
                # hidden states: one (layer, seq-tile) block per grid step
                pl.BlockSpec((1, B, tile_s, H), lambda l, s: (l, 0, s, 0)),
                pl.BlockSpec((1, B, tile_s, H), lambda l, s: (l, 0, s, 0)),
            ],
            out_specs=pl.BlockSpec((1, 8, 128), lambda l, s: (l, 0, 0)),
            scratch_shapes=[
                pltpu.VMEM((B, 1, H), jnp.float32),   # pooled-sum accumulator (orig)
                pltpu.VMEM((B, 1, H), jnp.float32),   # pooled-sum accumulator (recon)
            ],
        ),
        compiler_params=pltpu.CompilerParams(
            dimension_semantics=("parallel", "arbitrary"),
            vmem_limit_bytes=vmem_limit,
        ),
    )(layer_weights, mask_o, mask_r, hidden_orig, hidden_recon)

    return jnp.sum(out[:, 0, 0])


def _reference_loss(mask_o, mask_r, hid_o, hid_r):
    """Pure-JAX reference replicating the PyTorch math, for validation."""
    L = hid_o.shape[0]
    total = 0.0
    for i in range(L):
        def pooled_norm(h, m):
            s = jnp.sum(h * m[:, :, None], axis=1)
            c = jnp.maximum(jnp.sum(m, axis=1, keepdims=True), 1e-9)
            a = s / c
            n = jnp.linalg.norm(a, axis=1, keepdims=True)
            return a / jnp.maximum(n, 1e-9)
        eo = pooled_norm(hid_o[i].astype(jnp.float32), mask_o)
        er = pooled_norm(hid_r[i].astype(jnp.float32), mask_r)
        dot = jnp.sum(eo * er, axis=1)
        sim = dot / jnp.maximum(
            jnp.linalg.norm(eo, axis=1) * jnp.linalg.norm(er, axis=1), 1e-8)
        w = LAYER_WEIGHTS.get(-(i + 1), 0.25)
        total = total + w * (1.0 - jnp.mean(sim))
    return total


if __name__ == "__main__":
    # 4 BERT layers, batch 2, seq 8, hidden 32 — small stand-in shapes.
    L, B, S, H = 4, 2, 8, 32
    key = jax.random.PRNGKey(0)
    k1, k2 = jax.random.split(key)

    hidden_orig = jax.random.normal(k1, (L, B, S, H), dtype=jnp.float32)
    hidden_recon = jax.random.normal(k2, (L, B, S, H), dtype=jnp.float32)

    # attention masks: valid lengths [8, 5] for orig, [6, 8] for recon
    pos = jnp.arange(S)[None, :]
    mask_orig = (pos < jnp.array([[8], [5]])).astype(jnp.float32)
    mask_recon = (pos < jnp.array([[6], [8]])).astype(jnp.float32)

    loss = jax.block_until_ready(
        semantic_perceptual_loss(mask_orig, mask_recon, hidden_orig, hidden_recon))
    ref = _reference_loss(mask_orig, mask_recon, hidden_orig, hidden_recon)
    assert jnp.allclose(loss, ref, rtol=1e-4, atol=1e-4), (loss, ref)

    # bf16 hidden states (production path: halves HBM traffic on this
    # bandwidth-bound kernel; MXU accumulation stays in f32).
    loss_bf16 = jax.block_until_ready(semantic_perceptual_loss(
        mask_orig, mask_recon,
        hidden_orig.astype(jnp.bfloat16), hidden_recon.astype(jnp.bfloat16)))
    assert jnp.abs(loss_bf16 - ref) < 5e-2, (loss_bf16, ref)

    # Multi-tile path: seq 256 with a deliberately tiny tile budget so the
    # sequence axis splits across grid steps (exercises init/accumulate/finalize).
    L2, B2, S2, H2 = 4, 2, 256, 32
    k3, k4 = jax.random.split(jax.random.PRNGKey(1))
    ho2 = jax.random.normal(k3, (L2, B2, S2, H2), dtype=jnp.float32)
    hr2 = jax.random.normal(k4, (L2, B2, S2, H2), dtype=jnp.float32)
    pos2 = jnp.arange(S2)[None, :]
    mo2 = (pos2 < jnp.array([[200], [77]])).astype(jnp.float32)
    mr2 = (pos2 < jnp.array([[256], [100]])).astype(jnp.float32)
    loss2 = jax.block_until_ready(semantic_perceptual_loss(
        mo2, mr2, ho2, hr2, tile_budget_bytes=32 * 1024))
    ref2 = _reference_loss(mo2, mr2, ho2, hr2)
    assert jnp.allclose(loss2, ref2, rtol=1e-4, atol=1e-4), (loss2, ref2)

    print("KERNEL_OK")
</pallas_src>

<mosaic_0001>
module attributes {stable_mosaic.version = 11 : i64} {
  func.func @_semantic_loss_kernel(%arg0: i32, %arg1: i32, %arg2: memref<4xf32, #tpu.memory_space<smem>>, %arg3: memref<2x1x8xf32, #tpu.memory_space<vmem>>, %arg4: memref<2x1x8xf32, #tpu.memory_space<vmem>>, %arg5: memref<1x2x8x32xf32, #tpu.memory_space<vmem>>, %arg6: memref<1x2x8x32xf32, #tpu.memory_space<vmem>>, %arg7: memref<1x8x128xf32, #tpu.memory_space<vmem>>, %arg8: memref<2x1x32xf32, #tpu.memory_space<vmem>>, %arg9: memref<2x1x32xf32, #tpu.memory_space<vmem>>) attributes {dimension_semantics = [#tpu.dimension_semantics<parallel>, #tpu.dimension_semantics<arbitrary>], iteration_bounds = array<i64: 4, 1>, scalar_prefetch = 0 : i64, scratch_operands = 2 : i64, tpu.core_type = #tpu.core_type<tc>, window_params = [{transform_indices = @transform_0, window_bounds = array<i64: 4>}, {transform_indices = @transform_1, window_bounds = array<i64: 2, 1, 8>}, {transform_indices = @transform_2, window_bounds = array<i64: 2, 1, 8>}, {transform_indices = @transform_3, window_bounds = array<i64: 1, 2, 8, 32>}, {transform_indices = @transform_4, window_bounds = array<i64: 1, 2, 8, 32>}, {transform_indices = @transform_5, window_bounds = array<i64: 1, 8, 128>}]} {
    %c0_i32 = arith.constant 0 : i32
    %0 = arith.cmpi eq, %arg1, %c0_i32 : i32
    %1 = arith.extui %0 : i1 to i32
    %c0_i32_0 = arith.constant 0 : i32
    %2 = arith.cmpi ne, %1, %c0_i32_0 : i32
    scf.if %2 {
      %cst_29 = arith.constant 0.000000e+00 : f32
      %20 = vector.broadcast %cst_29 : f32 to vector<2x1x32xf32>
      %c0_30 = arith.constant 0 : index
      %c0_31 = arith.constant 0 : index
      %c0_32 = arith.constant 0 : index
      %21 = vector.load %arg8[%c0_30, %c0_31, %c0_32] : memref<2x1x32xf32, #tpu.memory_space<vmem>>, vector<2x1x32xf32>
      tpu.vector_store %arg8[%c0_30, %c0_31, %c0_32], %20 {strides = array<i32>} : memref<2x1x32xf32, #tpu.memory_space<vmem>>, vector<2x1x32xf32>,
      %cst_33 = arith.constant 0.000000e+00 : f32
      %22 = vector.broadcast %cst_33 : f32 to vector<2x1x32xf32>
      %c0_34 = arith.constant 0 : index
      %c0_35 = arith.constant 0 : index
      %c0_36 = arith.constant 0 : index
      %23 = vector.load %arg9[%c0_34, %c0_35, %c0_36] : memref<2x1x32xf32, #tpu.memory_space<vmem>>, vector<2x1x32xf32>
      tpu.vector_store %arg9[%c0_34, %c0_35, %c0_36], %22 {strides = array<i32>} : memref<2x1x32xf32, #tpu.memory_space<vmem>>, vector<2x1x32xf32>,
    } else {
    }
    %c0 = arith.constant 0 : index
    %c0_1 = arith.constant 0 : index
    %c0_2 = arith.constant 0 : index
    %3 = vector.load %arg3[%c0, %c0_1, %c0_2] : memref<2x1x8xf32, #tpu.memory_space<vmem>>, vector<2x1x8xf32>
    %c0_3 = arith.constant 0 : index
    %c0_4 = arith.constant 0 : index
    %c0_5 = arith.constant 0 : index
    %4 = vector.load %arg4[%c0_3, %c0_4, %c0_5] : memref<2x1x8xf32, #tpu.memory_space<vmem>>, vector<2x1x8xf32>
    %c0_6 = arith.constant 0 : index
    %c0_7 = arith.constant 0 : index
    %c0_8 = arith.constant 0 : index
    %c0_9 = arith.constant 0 : index
    %5 = vector.load %arg5[%c0_6, %c0_7, %c0_8, %c0_9] : memref<1x2x8x32xf32, #tpu.memory_space<vmem>>, vector<1x2x8x32xf32>
    %6 = vector.shape_cast %5 : vector<1x2x8x32xf32> to vector<2x8x32xf32>
    %c0_10 = arith.constant 0 : index
    %c0_11 = arith.constant 0 : index
    %c0_12 = arith.constant 0 : index
    %c0_13 = arith.constant 0 : index
    %7 = vector.load %arg6[%c0_10, %c0_11, %c0_12, %c0_13] : memref<1x2x8x32xf32, #tpu.memory_space<vmem>>, vector<1x2x8x32xf32>
    %8 = vector.shape_cast %7 : vector<1x2x8x32xf32> to vector<2x8x32xf32>
    %c0_14 = arith.constant 0 : index
    %c0_15 = arith.constant 0 : index
    %c0_16 = arith.constant 0 : index
    %9 = vector.load %arg8[%c0_14, %c0_15, %c0_16] : memref<2x1x32xf32, #tpu.memory_space<vmem>>, vector<2x1x32xf32>
    %cst = arith.constant dense<0.000000e+00> : vector<2x1x32xf32>
    %10 = tpu.matmul %3, %6, %cst {dimension_numbers = #tpu.dot_dimension_numbers<[2], [1], [1], [2], [0, 0, 0, 1, 1, 2], [0], [0]>, precision = #tpu.contract_precision<fp32>} : vector<2x1x8xf32>, vector<2x8x32xf32>, vector<2x1x32xf32> -> vector<2x1x32xf32>
    %11 = arith.addf %9, %10 : vector<2x1x32xf32>
    %c0_17 = arith.constant 0 : index
    %c0_18 = arith.constant 0 : index
    %c0_19 = arith.constant 0 : index
    %12 = vector.load %arg8[%c0_17, %c0_18, %c0_19] : memref<2x1x32xf32, #tpu.memory_space<vmem>>, vector<2x1x32xf32>
    tpu.vector_store %arg8[%c0_17, %c0_18, %c0_19], %11 {strides = array<i32>} : memref<2x1x32xf32, #tpu.memory_space<vmem>>, vector<2x1x32xf32>,
    %c0_20 = arith.constant 0 : index
    %c0_21 = arith.constant 0 : index
    %c0_22 = arith.constant 0 : index
    %13 = vector.load %arg9[%c0_20, %c0_21, %c0_22] : memref<2x1x32xf32, #tpu.memory_space<vmem>>, vector<2x1x32xf32>
    %cst_23 = arith.constant dense<0.000000e+00> : vector<2x1x32xf32>
    %14 = tpu.matmul %4, %8, %cst_23 {dimension_numbers = #tpu.dot_dimension_numbers<[2], [1], [1], [2], [0, 0, 0, 1, 1, 2], [0], [0]>, precision = #tpu.contract_precision<fp32>} : vector<2x1x8xf32>, vector<2x8x32xf32>, vector<2x1x32xf32> -> vector<2x1x32xf32>
    %15 = arith.addf %13, %14 : vector<2x1x32xf32>
    %c0_24 = arith.constant 0 : index
    %c0_25 = arith.constant 0 : index
    %c0_26 = arith.constant 0 : index
    %16 = vector.load %arg9[%c0_24, %c0_25, %c0_26] : memref<2x1x32xf32, #tpu.memory_space<vmem>>, vector<2x1x32xf32>
    tpu.vector_store %arg9[%c0_24, %c0_25, %c0_26], %15 {strides = array<i32>} : memref<2x1x32xf32, #tpu.memory_space<vmem>>, vector<2x1x32xf32>,
    %c0_i32_27 = arith.constant 0 : i32
    %17 = arith.cmpi eq, %arg1, %c0_i32_27 : i32
    %18 = arith.extui %17 : i1 to i32
    %c0_i32_28 = arith.constant 0 : i32
    %19 = arith.cmpi ne, %18, %c0_i32_28 : i32
    scf.if %19 {
      %c0_29 = arith.constant 0 : index
      %c0_30 = arith.constant 0 : index
      %c0_31 = arith.constant 0 : index
      %20 = vector.load %arg8[%c0_29, %c0_30, %c0_31] : memref<2x1x32xf32, #tpu.memory_space<vmem>>, vector<2x1x32xf32>
      %c0_32 = arith.constant 0 : index
      %c0_33 = arith.constant 0 : index
      %c0_34 = arith.constant 0 : index
      %21 = vector.load %arg9[%c0_32, %c0_33, %c0_34] : memref<2x1x32xf32, #tpu.memory_space<vmem>>, vector<2x1x32xf32>
      %22 = arith.mulf %20, %20 : vector<2x1x32xf32>
      %cst_35 = arith.constant dense<0.000000e+00> : vector<2x1xf32>
      %23 = vector.multi_reduction <add>, %22, %cst_35 [2] : vector<2x1x32xf32> to vector<2x1xf32>
      %24 = vector.shape_cast %23 : vector<2x1xf32> to vector<2x1x1xf32>
      %cst_36 = arith.constant 1.000000e-18 : f32
      %25 = vector.broadcast %cst_36 : f32 to vector<2x1x1xf32>
      %26 = arith.maximumf %24, %25 : vector<2x1x1xf32>
      %27 = math.rsqrt %26 : vector<2x1x1xf32>
      %28 = vector.broadcast %27 : vector<2x1x1xf32> to vector<2x1x32xf32>
      %29 = arith.mulf %20, %28 : vector<2x1x32xf32>
      %30 = arith.mulf %21, %21 : vector<2x1x32xf32>
      %cst_37 = arith.constant dense<0.000000e+00> : vector<2x1xf32>
      %31 = vector.multi_reduction <add>, %30, %cst_37 [2] : vector<2x1x32xf32> to vector<2x1xf32>
      %32 = vector.shape_cast %31 : vector<2x1xf32> to vector<2x1x1xf32>
      %cst_38 = arith.constant 1.000000e-18 : f32
      %33 = vector.broadcast %cst_38 : f32 to vector<2x1x1xf32>
      %34 = arith.maximumf %32, %33 : vector<2x1x1xf32>
      %35 = math.rsqrt %34 : vector<2x1x1xf32>
      %36 = vector.broadcast %35 : vector<2x1x1xf32> to vector<2x1x32xf32>
      %37 = arith.mulf %21, %36 : vector<2x1x32xf32>
      %38 = arith.mulf %29, %37 : vector<2x1x32xf32>
      %cst_39 = arith.constant dense<0.000000e+00> : vector<2x1xf32>
      %39 = vector.multi_reduction <add>, %38, %cst_39 [2] : vector<2x1x32xf32> to vector<2x1xf32>
      %40 = vector.shape_cast %39 : vector<2x1xf32> to vector<2x1x1xf32>
      %cst_40 = arith.constant dense<0.000000e+00> : vector<1x1xf32>
      %41 = vector.multi_reduction <add>, %40, %cst_40 [0] : vector<2x1x1xf32> to vector<1x1xf32>
      %42 = vector.shape_cast %41 : vector<1x1xf32> to vector<1x1x1xf32>
      %cst_41 = arith.constant 5.000000e-01 : f32
      %43 = vector.broadcast %cst_41 : f32 to vector<1x1x1xf32>
      %44 = arith.mulf %42, %43 : vector<1x1x1xf32>
      %45 = arith.index_cast %arg0 : i32 to index
      %46 = memref.load %arg2[%45] : memref<4xf32, #tpu.memory_space<smem>>
      %cst_42 = arith.constant 1.000000e+00 : f32
      %47 = vector.broadcast %cst_42 : f32 to vector<1x1x1xf32>
      %48 = arith.subf %47, %44 : vector<1x1x1xf32>
      %49 = vector.broadcast %46 : f32 to vector<1x1x1xf32>
      %50 = arith.mulf %49, %48 : vector<1x1x1xf32>
      %51 = vector.shape_cast %50 : vector<1x1x1xf32> to vector<1x1x1xf32>
      %52 = vector.broadcast %51 : vector<1x1x1xf32> to vector<1x8x128xf32>
      %c0_43 = arith.constant 0 : index
      %c0_44 = arith.constant 0 : index
      %c0_45 = arith.constant 0 : index
      %53 = vector.load %arg7[%c0_43, %c0_44, %c0_45] : memref<1x8x128xf32, #tpu.memory_space<vmem>>, vector<1x8x128xf32>
      tpu.vector_store %arg7[%c0_43, %c0_44, %c0_45], %52 {strides = array<i32>} : memref<1x8x128xf32, #tpu.memory_space<vmem>>, vector<1x8x128xf32>,
    } else {
    }
    return
  }
  func.func @transform_0(%arg0: i32, %arg1: i32) -> i32 {
    %c0_i32 = arith.constant 0 : i32
    %c0_i32_0 = arith.constant 0 : i32
    return %c0_i32 : i32
  }
  func.func @transform_1(%arg0: i32, %arg1: i32) -> (i32, i32, i32) {
    %c0_i32 = arith.constant 0 : i32
    %c0_i32_0 = arith.constant 0 : i32
    %c0_i32_1 = arith.constant 0 : i32
    return %c0_i32, %c0_i32_0, %arg1 : i32, i32, i32
  }
  func.func @transform_2(%arg0: i32, %arg1: i32) -> (i32, i32, i32) {
    %c0_i32 = arith.constant 0 : i32
    %c0_i32_0 = arith.constant 0 : i32
    %c0_i32_1 = arith.constant 0 : i32
    return %c0_i32, %c0_i32_0, %arg1 : i32, i32, i32
  }
  func.func @transform_3(%arg0: i32, %arg1: i32) -> (i32, i32, i32, i32) {
    %c0_i32 = arith.constant 0 : i32
    %c0_i32_0 = arith.constant 0 : i32
    %c0_i32_1 = arith.constant 0 : i32
    return %arg0, %c0_i32, %arg1, %c0_i32_0 : i32, i32, i32, i32
  }
  func.func @transform_4(%arg0: i32, %arg1: i32) -> (i32, i32, i32, i32) {
    %c0_i32 = arith.constant 0 : i32
    %c0_i32_0 = arith.constant 0 : i32
    %c0_i32_1 = arith.constant 0 : i32
    return %arg0, %c0_i32, %arg1, %c0_i32_0 : i32, i32, i32, i32
  }
  func.func @transform_5(%arg0: i32, %arg1: i32) -> (i32, i32, i32) {
    %c0_i32 = arith.constant 0 : i32
    %c0_i32_0 = arith.constant 0 : i32
    %c0_i32_1 = arith.constant 0 : i32
    return %arg0, %c0_i32, %c0_i32_0 : i32, i32, i32
  }
}

</mosaic_0001>

<llo_original>
// kernel: tpu_custom_call.1
$region0: #{tpu_custom_call.1}
  #allocation0 [shape = 'u32[]', space=smem, size = 0x4, offset = 0x4, fixed_abs, tag = 'smem constant byte address 0x4 - core index']
  #allocation1 [shape = 'u32[144,128]{1,0:T(1,128)}', space=vmem, size = 0x12000, scoped, tag = 'internal scratch']
  #allocation2 [shape = 'f32[2,1,32]{2,1,0:T(1,128)}', space=vmem, size = 0x400, scoped, tag = 'scratch operand']
  #allocation3 [shape = 'f32[2,1,32]{2,1,0:T(1,128)}', space=vmem, size = 0x400, scoped, tag = 'scratch operand']
  %s0 = inlined_call_operand.hbm [shape: f32[4], index: 0, kind: input, shape index: {}]
  %s1 = inlined_call_operand.vmem [shape: f32[2,1,8], index: 1, kind: input, shape index: {}]
  %s2 = inlined_call_operand.vmem [shape: f32[2,1,8], index: 2, kind: input, shape index: {}]
  %s3 = inlined_call_operand.hbm [shape: f32[4,2,8,32], index: 3, kind: input, shape index: {}]
  %s4 = inlined_call_operand.hbm [shape: f32[4,2,8,32], index: 4, kind: input, shape index: {}]
  %s5 = inlined_call_operand.hbm [shape: f32[4,8,128], index: 5, kind: output, shape index: {}]
  %s6 = sld [smem:[#allocation0]]
  $region73: #{tpu_custom_call.1} parent=0
    _
  %s8 = ssub.s32 1, %s6
  %s9 = scalar_select 0, %s8, %s6
  $region1: #{tpu_custom_call.1} parent=0
    #allocation4 [shape = 'u8[512]{0}', space=smem, size = 0x200, scoped, tag = 'input window, operand 0, single buffered']
    #allocation5 [shape = 's32[2]{0}', space=sflag, size = 0x8, scoped, tag = 'scoped memory for tpu_custom_call.1']
    #allocation6 [shape = 's32[2]{0}', space=sflag, size = 0x8, scoped, tag = 'scoped memory for tpu_custom_call.1']
    #allocation7 [shape = 's32[2]{0}', space=sflag, size = 0x8, scoped, tag = 'scoped memory for tpu_custom_call.1']
    #allocation8 [shape = 'u8[16384]{0}', space=vmem, size = 0x4000, scoped, tag = 'input window, operand 3']
    #allocation9 [shape = 'u8[16384]{0}', space=vmem, size = 0x4000, scoped, tag = 'input window, operand 4']
    #allocation10 [shape = 's32[2]{0}', space=sflag, size = 0x8, scoped, tag = 'scoped memory for tpu_custom_call.1']
    #allocation11 [shape = 'u8[8192]{0}', space=vmem, size = 0x2000, scoped, tag = 'output window, operand 0']
    %10 = vsyncpa [#allocation7], 0
    %11 = vsyncpa [#allocation5], 0
    %s12 = scalar_lea.sflag [#allocation5], 1
    %13 = vsyncpa %s12, 0
    %14 = vsyncpa [#allocation10], 0
    %s15 = scalar_lea.sflag [#allocation10], 1
    %16 = vsyncpa %s15, 0
    %17 = vsyncpa [#allocation6], 0
    %s18 = scalar_lea.sflag [#allocation6], 1
    %19 = vsyncpa %s18, 0
    loop: start=0, step=1, limit=6
    $region2: #{tpu_custom_call.1} parent=1 // loop_pre_header
      _
    $region3: #{tpu_custom_call.1} parent=1 // loop_header
      %s21 = sphi 0, %s25
      %p22 = scmp.ge.s32.totalorder %s21, 6
      %s28 = sphi 0, %s40
      %s29 = sphi 0, %s36
      %s30 = sphi 0, %s28
      %s31 = sphi 0, %s29
      %s32 = sphi 0, %s30
      %s33 = sphi 0, %s31
      %s41 = sphi 0, %s41
      %s43 = sphi 0, %s41
      %s44 = sphi 0, %s43
      %s58 = sphi 0, %s44
      %s64 = sphi 0, %s66
      %s67 = sphi 0, %s64
      %s68 = sphi 0, %s67
      %s84 = sphi 0, %s68
      %s90 = sphi 0, %s92
      %s93 = sphi 0, %s90
      %s94 = sphi 0, %s93
      %s110 = sphi 0, %s94
      %s118 = sphi 0, %s120
      %s121 = sphi 0, %s118
      %s122 = sphi 0, %s121
      %s138 = sphi 0, %s122
      %s146 = sphi 0, %s148
      %s149 = sphi 0, %s146
      %s150 = sphi 0, %s149
      %s166 = sphi 0, %s150
      %s172 = sphi 0, %s174
      %s175 = sphi 0, %s172
      %s176 = sphi 0, %s175
      %s192 = sphi 0, %s176
    $region4: #{tpu_custom_call.1} parent=1 // loop_header_branch
      %24 = sbr.rel (%p22) target = $region8
    $region5: #{tpu_custom_call.1} parent=1 // loop_body
      %s26 = ssub.s32 %s21, 1
      %s27 = ssub.s32 %s21, 2
      %s34 = sadd.s32 1, %s29
      %p35 = scmp.ge.s32.totalorder %s34, 1
      %s36 = scalar_select %p35, 0, %s34
      %s37 = sadd.s32 1, %s28
      %s38 = scalar_select %p35, %s37, %s28
      %p39 = scmp.ge.s32.totalorder %s38, 4
      %s40 = scalar_select %p39, 0, %s38
      %s42 = sadd.s32 %s41, 1
      %p45 = scmp.eq.s32.totalorder %s21, 3
      %p46 = scmp.ne.s32.totalorder %s41, %s43
      %p47 = scmp.eq.s32.totalorder %s21, 0
      %p48 = por %p46, %p47
      %p49 = scmp.ne.s32.totalorder %s41, %s43
      %p50 = scmp.eq.s32.totalorder %s26, 3
      %p51 = por %p49, %p50
      %p52 = scmp.ne.s32.totalorder %s43, %s44
      %p53 = scmp.eq.s32.totalorder %s26, 0
      %p54 = por %p52, %p53
      %p55 = scmp.ne.s32.totalorder %s43, %s44
      %p56 = scmp.eq.s32.totalorder %s27, 3
      %p57 = por %p55, %p56
      %p59 = scmp.ne.s32.totalorder %s44, %s58
      %p60 = scmp.eq.s32.totalorder %s27, 0
      %p61 = por %p59, %p60
      %s62 = ssub.s32 %s29, %s36
      %p63 = scmp.eq.s32.totalorder %s62, 0
      %s65 = sadd.s32 %s64, 1
      %s66 = scalar_select %p63, %s64, %s65
      %p69 = pneg %p63
      %p70 = scmp.eq.s32.totalorder %s21, 3
      %p71 = por %p69, %p70
      %p72 = scmp.ne.s32.totalorder %s64, %s67
      %p73 = scmp.eq.s32.totalorder %s21, 0
      %p74 = por %p72, %p73
      %p75 = scmp.ne.s32.totalorder %s64, %s67
      %p76 = scmp.eq.s32.totalorder %s26, 3
      %p77 = por %p75, %p76
      %p78 = scmp.ne.s32.totalorder %s67, %s68
      %p79 = scmp.eq.s32.totalorder %s26, 0
      %p80 = por %p78, %p79
      %p81 = scmp.ne.s32.totalorder %s67, %s68
      %p82 = scmp.eq.s32.totalorder %s27, 3
      %p83 = por %p81, %p82
      %p85 = scmp.ne.s32.totalorder %s68, %s84
      %p86 = scmp.eq.s32.totalorder %s27, 0
      %p87 = por %p85, %p86
      %s88 = ssub.s32 %s29, %s36
      %p89 = scmp.eq.s32.totalorder %s88, 0
      %s91 = sadd.s32 %s90, 1
      %s92 = scalar_select %p89, %s90, %s91
      %p95 = pneg %p89
      %p96 = scmp.eq.s32.totalorder %s21, 3
      %p97 = por %p95, %p96
      %p98 = scmp.ne.s32.totalorder %s90, %s93
      %p99 = scmp.eq.s32.totalorder %s21, 0
      %p100 = por %p98, %p99
      %p101 = scmp.ne.s32.totalorder %s90, %s93
      %p102 = scmp.eq.s32.totalorder %s26, 3
      %p103 = por %p101, %p102
      %p104 = scmp.ne.s32.totalorder %s93, %s94
      %p105 = scmp.eq.s32.totalorder %s26, 0
      %p106 = por %p104, %p105
      %p107 = scmp.ne.s32.totalorder %s93, %s94
      %p108 = scmp.eq.s32.totalorder %s27, 3
      %p109 = por %p107, %p108
      %p111 = scmp.ne.s32.totalorder %s94, %s110
      %p112 = scmp.eq.s32.totalorder %s27, 0
      %p113 = por %p111, %p112
      %s114 = ssub.s32 %s28, %s40
      %s115 = ssub.s32 %s29, %s36
      %s116 = sor.u32 %s114, %s115
      %p117 = scmp.eq.s32.totalorder %s116, 0
      %s119 = sadd.s32 %s118, 1
      %s120 = scalar_select %p117, %s118, %s119
      %p123 = pneg %p117
      %p124 = scmp.eq.s32.totalorder %s21, 3
      %p125 = por %p123, %p124
      %p126 = scmp.ne.s32.totalorder %s118, %s121
      %p127 = scmp.eq.s32.totalorder %s21, 0
      %p128 = por %p126, %p127
      %p129 = scmp.ne.s32.totalorder %s118, %s121
      %p130 = scmp.eq.s32.totalorder %s26, 3
      %p131 = por %p129, %p130
      %p132 = scmp.ne.s32.totalorder %s121, %s122
      %p133 = scmp.eq.s32.totalorder %s26, 0
      %p134 = por %p132, %p133
      %p135 = scmp.ne.s32.totalorder %s121, %s122
      %p136 = scmp.eq.s32.totalorder %s27, 3
      %p137 = por %p135, %p136
      %p139 = scmp.ne.s32.totalorder %s122, %s138
      %p140 = scmp.eq.s32.totalorder %s27, 0
      %p141 = por %p139, %p140
      %s142 = ssub.s32 %s28, %s40
      %s143 = ssub.s32 %s29, %s36
      %s144 = sor.u32 %s142, %s143
      %p145 = scmp.eq.s32.totalorder %s144, 0
      %s147 = sadd.s32 %s146, 1
      %s148 = scalar_select %p145, %s146, %s147
      %p151 = pneg %p145
      %p152 = scmp.eq.s32.totalorder %s21, 3
      %p153 = por %p151, %p152
      %p154 = scmp.ne.s32.totalorder %s146, %s149
      %p155 = scmp.eq.s32.totalorder %s21, 0
      %p156 = por %p154, %p155
      %p157 = scmp.ne.s32.totalorder %s146, %s149
      %p158 = scmp.eq.s32.totalorder %s26, 3
      %p159 = por %p157, %p158
      %p160 = scmp.ne.s32.totalorder %s149, %s150
      %p161 = scmp.eq.s32.totalorder %s26, 0
      %p162 = por %p160, %p161
      %p163 = scmp.ne.s32.totalorder %s149, %s150
      %p164 = scmp.eq.s32.totalorder %s27, 3
      %p165 = por %p163, %p164
      %p167 = scmp.ne.s32.totalorder %s150, %s166
      %p168 = scmp.eq.s32.totalorder %s27, 0
      %p169 = por %p167, %p168
      %s170 = ssub.s32 %s28, %s40
      %p171 = scmp.eq.s32.totalorder %s170, 0
      %s173 = sadd.s32 %s172, 1
      %s174 = scalar_select %p171, %s172, %s173
      %p177 = pneg %p171
      %p178 = scmp.eq.s32.totalorder %s21, 3
      %p179 = por %p177, %p178
      %p180 = scmp.ne.s32.totalorder %s172, %s175
      %p181 = scmp.eq.s32.totalorder %s21, 0
      %p182 = por %p180, %p181
      %p183 = scmp.ne.s32.totalorder %s172, %s175
      %p184 = scmp.eq.s32.totalorder %s26, 3
      %p185 = por %p183, %p184
      %p186 = scmp.ne.s32.totalorder %s175, %s176
      %p187 = scmp.eq.s32.totalorder %s26, 0
      %p188 = por %p186, %p187
      %p189 = scmp.ne.s32.totalorder %s175, %s176
      %p190 = scmp.eq.s32.totalorder %s27, 3
      %p191 = por %p189, %p190
      %p193 = scmp.ne.s32.totalorder %s176, %s192
      %p194 = scmp.eq.s32.totalorder %s27, 0
      %p195 = por %p193, %p194
      %p196 = scmp.le.s32.totalorder 1, %s21
      %p197 = scmp.lt.s32.totalorder %s21, 5
      %p198 = pnand %p196, %p197
      %p199 = pneg %p198
      // Predicated region
      $region9: #{tpu_custom_call.1} parent=5 // pred_check
        _
      $region10: #{tpu_custom_call.1} parent=5 // pred_check_branch
        %201 = sbr.rel (%p198) target = $region12
      $region11: #{tpu_custom_call.1} parent=5 // pred_region
        %s202 = ssub.s32 %s21, 1
        // Predicated region
        $region13: #{tpu_custom_call.1} parent=11 // pred_check
          %p203 = pneg %p54
        $region14: #{tpu_custom_call.1} parent=11 // pred_check_branch
          %205 = sbr.rel (%p203) target = $region16
        $region15: #{tpu_custom_call.1} parent=11 // pred_region
          %s207 = ssub.s32 16, 16
          %208 = vsyncadd [#allocation7], %s207
          %211 = dma.hbm_to_smem %s0, 16, [#allocation4], [#allocation7]
        $region16: #{tpu_custom_call.1} parent=11 // pred_fallthru
          _
        // Predicated region
        $region17: #{tpu_custom_call.1} parent=11 // pred_check
          %p212 = pneg %p80
        $region18: #{tpu_custom_call.1} parent=11 // pred_check_branch
          %214 = sbr.rel (%p212) target = $region20
        $region19: #{tpu_custom_call.1} parent=11 // pred_region
          %p215 = scmp.lt.s32.totalorder %s31, 0
          %s216 = scalar_select %p215, %s31, 0
          %s217 = scalar_lea.vmem %s1, %s216
        $region20: #{tpu_custom_call.1} parent=11 // pred_fallthru
          _
        // Predicated region
        $region21: #{tpu_custom_call.1} parent=11 // pred_check
          %p218 = pneg %p106
        $region22: #{tpu_custom_call.1} parent=11 // pred_check_branch
          %220 = sbr.rel (%p218) target = $region24
        $region23: #{tpu_custom_call.1} parent=11 // pred_region
          %p221 = scmp.lt.s32.totalorder %s31, 0
          %s222 = scalar_select %p221, %s31, 0
          %s223 = scalar_lea.vmem %s2, %s222
        $region24: #{tpu_custom_call.1} parent=11 // pred_fallthru
          _
      $region12: #{tpu_custom_call.1} parent=5 // pred_fallthru
        _
      %p224 = scmp.lt.s32.totalorder %s21, 4
      // Predicated region
      $region25: #{tpu_custom_call.1} parent=5 // pred_check
        %p225 = pneg %p224
      $region26: #{tpu_custom_call.1} parent=5 // pred_check_branch
        %227 = sbr.rel (%p225) target = $region28
      $region27: #{tpu_custom_call.1} parent=5 // pred_region
        // Predicated region
        $region29: #{tpu_custom_call.1} parent=27 // pred_check
          %p228 = pneg %p128
        $region30: #{tpu_custom_call.1} parent=27 // pred_check_branch
          %230 = sbr.rel (%p228) target = $region32
        $region31: #{tpu_custom_call.1} parent=27 // pred_region
          %s231 = sand.u32 %s118, 1
          %s232 = scalar_lea.sflag [#allocation5], %s231
          %s233 = sand.u32 %s118, 1
          %s234 = smul.addr %s233, 16
          %s235 = scalar_lea.vmem [#allocation8], %s234
          %s237 = ssub.s32 256, 256
          %238 = vsyncadd %s232, %s237
          %s239 = smul.addr %s28, 2
          %s240 = sadd.s32 %s29, %s239
          %s241 = smul.addr %s240, 128
          %s242 = scalar_lea.hbm %s3, %s241
          %s243 = sshll.u32 %s235, 4
          %s244 = int_to_ptr.vmem [resolvable:$true] %s243
          %249 = dma.hbm_to_vmem [thread:$0]  %s242, 256, %s244, %s232, 128, 128, 8
        $region32: #{tpu_custom_call.1} parent=27 // pred_fallthru
          _
        // Predicated region
        $region33: #{tpu_custom_call.1} parent=27 // pred_check
          %p250 = pneg %p156
        $region34: #{tpu_custom_call.1} parent=27 // pred_check_branch
          %252 = sbr.rel (%p250) target = $region36
        $region35: #{tpu_custom_call.1} parent=27 // pred_region
          %s253 = sand.u32 %s146, 1
          %s254 = scalar_lea.sflag [#allocation10], %s253
          %s255 = sand.u32 %s146, 1
          %s256 = smul.addr %s255, 16
          %s257 = scalar_lea.vmem [#allocation9], %s256
          %s259 = ssub.s32 256, 256
          %260 = vsyncadd %s254, %s259
          %s261 = smul.addr %s28, 2
          %s262 = sadd.s32 %s29, %s261
          %s263 = smul.addr %s262, 128
          %s264 = scalar_lea.hbm %s4, %s263
          %s265 = sshll.u32 %s257, 4
          %s266 = int_to_ptr.vmem [resolvable:$true] %s265
          %271 = dma.hbm_to_vmem [thread:$0]  %s264, 256, %s266, %s254, 128, 128, 8
        $region36: #{tpu_custom_call.1} parent=27 // pred_fallthru
          _
      $region28: #{tpu_custom_call.1} parent=5 // pred_fallthru
        _
      %p272 = scmp.le.s32.totalorder 1, %s21
      %p273 = scmp.lt.s32.totalorder %s21, 5
      %p274 = pnand %p272, %p273
      %p275 = pneg %p274
      // Predicated region
      $region37: #{tpu_custom_call.1} parent=5 // pred_check
        _
      $region38: #{tpu_custom_call.1} parent=5 // pred_check_branch
        %277 = sbr.rel (%p274) target = $region40
      $region39: #{tpu_custom_call.1} parent=5 // pred_region
        %s278 = ssub.s32 %s21, 1
        // Predicated region
        $region41: #{tpu_custom_call.1} parent=39 // pred_check
          %p279 = pneg %p54
        $region42: #{tpu_custom_call.1} parent=39 // pred_check_branch
          %281 = sbr.rel (%p279) target = $region44
        $region43: #{tpu_custom_call.1} parent=39 // pred_region
          %282 = dma.done [#allocation7], 16
        $region44: #{tpu_custom_call.1} parent=39 // pred_fallthru
          _
        %s283 = sand.u32 %s121, 1
        %s284 = scalar_lea.sflag [#allocation5], %s283
        %s285 = sand.u32 %s121, 1
        %s286 = smul.addr %s285, 16
        %s287 = scalar_lea.vmem [#allocation8], %s286
        // Predicated region
        $region45: #{tpu_custom_call.1} parent=39 // pred_check
          %p288 = pneg %p134
        $region46: #{tpu_custom_call.1} parent=39 // pred_check_branch
          %290 = sbr.rel (%p288) target = $region48
        $region47: #{tpu_custom_call.1} parent=39 // pred_region
          %291 = dma.done %s284, 256
        $region48: #{tpu_custom_call.1} parent=39 // pred_fallthru
          _
        %s292 = sand.u32 %s149, 1
        %s293 = scalar_lea.sflag [#allocation10], %s292
        %s294 = sand.u32 %s149, 1
        %s295 = smul.addr %s294, 16
        %s296 = scalar_lea.vmem [#allocation9], %s295
        // Predicated region
        $region49: #{tpu_custom_call.1} parent=39 // pred_check
          %p297 = pneg %p162
        $region50: #{tpu_custom_call.1} parent=39 // pred_check_branch
          %299 = sbr.rel (%p297) target = $region52
        $region51: #{tpu_custom_call.1} parent=39 // pred_region
          %300 = dma.done %s293, 256
        $region52: #{tpu_custom_call.1} parent=39 // pred_fallthru
          _
        %301 = sfence
        %p302 = pneg %p54
        %p303 = pneg %p51
        %p304 = scmp.lt.s32.totalorder %s31, 0
        %s305 = scalar_select %p304, %s31, 0
        %s306 = scalar_lea.vmem %s1, %s305
        %p307 = pneg %p80
        %p308 = pneg %p77
        %p309 = scmp.lt.s32.totalorder %s31, 0
        %s310 = scalar_select %p309, %s31, 0
        %s311 = scalar_lea.vmem %s2, %s310
        %p312 = pneg %p106
        %p313 = pneg %p103
        %s314 = sand.u32 %s121, 1
        %s315 = scalar_lea.sflag [#allocation5], %s314
        %s316 = sand.u32 %s121, 1
        %s317 = smul.addr %s316, 16
        %s318 = scalar_lea.vmem [#allocation8], %s317
        %p319 = pneg %p134
        %p320 = pneg %p131
        %s321 = sand.u32 %s149, 1
        %s322 = scalar_lea.sflag [#allocation10], %s321
        %s323 = sand.u32 %s149, 1
        %s324 = smul.addr %s323, 16
        %s325 = scalar_lea.vmem [#allocation9], %s324
        %p326 = pneg %p162
        %p327 = pneg %p159
        %p328 = pneg %p188
        %p329 = pneg %p185
        %s330 = sand.u32 %s175, 1
        %s331 = scalar_lea.sflag [#allocation6], %s330
        %s332 = sand.u32 %s175, 1
        %s333 = smul.addr %s332, 8
        %s334 = scalar_lea.vmem [#allocation11], %s333
        %p335 = scmp.lt.s32.totalorder %s31, 0
        %s336 = scalar_select %p335, %s31, 0
        %s337 = scalar_lea.vmem %s1, %s336
        %p338 = scmp.lt.s32.totalorder %s31, 0
        %s339 = scalar_select %p338, %s31, 0
        %s340 = scalar_lea.vmem %s2, %s339
        %p341 = scmp.eq.s32.totalorder %s31, 0
        // Predicated region
        $region53: #{tpu_custom_call.1} parent=39 // pred_check
          %p342 = pneg %p341
        $region54: #{tpu_custom_call.1} parent=39 // pred_check_branch
          %344 = sbr.rel (%p342) target = $region56
        $region55: #{tpu_custom_call.1} parent=39 // pred_region
          %vm345 = vcmask 253952
          %346 = vst.msk [vmem:[#allocation2] sm:$0x1] %vm345, 0.0
          %347 = vst.msk [vmem:[#allocation2 + $0x1] sm:$0x1] %vm345, 0.0
          %348 = vst.msk [vmem:[#allocation3] sm:$0x1] %vm345, 0.0
          %349 = vst.msk [vmem:[#allocation3 + $0x1] sm:$0x1] %vm345, 0.0
        $region56: #{tpu_custom_call.1} parent=39 // pred_fallthru
          _
        %v350 = vld [vmem:[%s337] sm:$0x1]
        %v351 = vld [vmem:[%s337 + $0x1] sm:$0x1]
        %v352 = vld [vmem:[%s340] sm:$0x1]
        %v353 = vld [vmem:[%s340 + $0x1] sm:$0x1]
        %v354 = vld [vmem:[%s287] sm:$0xff]
        %v355 = vld [vmem:[%s287 + $0x8] sm:$0xff]
        %v356 = vld [vmem:[%s296] sm:$0xff]
        %v357 = vld [vmem:[%s296 + $0x8] sm:$0xff]
        %v358 = vld [vmem:[#allocation2] sm:$0x1]
        %v359 = vld [vmem:[#allocation2 + $0x1] sm:$0x1]
        %vm360 = vcmask 64512
        %v362 = vsel %vm360, %v350, 0
        %364 = vmatprep.subr.mxu0 0.0
        %v365 = vand.u32 %v354, 4294901760
        %366 = vmatpush1.msra.mxu0 %v365
        %367 = vmatprep.subr.mxu0 0.0
        %368 = vmatpush1.msra.mxu0 0.0
        %369 = vmatprep.subr.mxu0 0.0
        %370 = vmatpush1.msra.mxu0 0.0
        %371 = vmatprep.subr.mxu0 0.0
        %372 = vmatpush1.msra.mxu0 0.0
        %373 = vmatprep.subr.mxu0 0.0
        %374 = vmatpush1.msra.mxu0 0.0
        %375 = vmatprep.subr.mxu0 0.0
        %376 = vmatpush1.msra.mxu0 0.0
        %377 = vmatprep.subr.mxu0 0.0
        %378 = vmatpush1.msra.mxu0 0.0
        %379 = vmatprep.subr.mxu0 0.0
        %380 = vmatpush1.msra.mxu0 0.0
        %381 = vmatprep.subr.mxu0 0.0
        %382 = vmatpush1.msra.mxu0 0.0
        %383 = vmatprep.subr.mxu0 0.0
        %384 = vmatpush1.msra.mxu0 0.0
        %385 = vmatprep.subr.mxu0 0.0
        %386 = vmatpush1.msra.mxu0 0.0
        %387 = vmatprep.subr.mxu0 0.0
        %388 = vmatpush1.msra.mxu0 0.0
        %389 = vmatprep.subr.mxu0 0.0
        %390 = vmatpush1.msra.mxu0 0.0
        %391 = vmatprep.subr.mxu0 0.0
        %392 = vmatpush1.msra.mxu0 0.0
        %393 = vmatprep.subr.mxu0 0.0
        %394 = vmatpush1.msra.mxu0 0.0
        %395 = vmatprep.subr.mxu0 0.0
        %396 = vmatpush1.msra.mxu0 0.0
        %397 = vmatprep.subr.mxu0 0.0
        %398 = vmatpush1.msra.mxu0 0.0
        %399 = vmatprep.subr.mxu0 0.0
        %400 = vmatpush1.msra.mxu0 0.0
        %401 = vmatprep.subr.mxu0 0.0
        %402 = vmatpush1.msra.mxu0 0.0
        %403 = vmatprep.subr.mxu0 0.0
        %404 = vmatpush1.msra.mxu0 0.0
        %405 = vmatprep.subr.mxu0 0.0
        %406 = vmatpush1.msra.mxu0 0.0
        %407 = vmatprep.subr.mxu0 0.0
        %408 = vmatpush1.msra.mxu0 0.0
        %409 = vmatprep.subr.mxu0 0.0
        %410 = vmatpush1.msra.mxu0 0.0
        %411 = vmatprep.subr.mxu0 0.0
        %412 = vmatpush1.msra.mxu0 0.0
        %413 = vmatprep.subr.mxu0 0.0
        %414 = vmatpush1.msra.mxu0 0.0
        %415 = vmatprep.subr.mxu0 0.0
        %416 = vmatpush1.msra.mxu0 0.0
        %417 = vmatprep.subr.mxu0 0.0
        %418 = vmatpush1.msra.mxu0 0.0
        %419 = vmatprep.subr.mxu0 0.0
        %420 = vmatpush1.msra.mxu0 0.0
        %421 = vmatprep.subr.mxu0 0.0
        %422 = vmatpush1.msra.mxu0 0.0
        %423 = vmatprep.subr.mxu0 0.0
        %424 = vmatpush1.msra.mxu0 0.0
        %425 = vmatprep.subr.mxu0 0.0
        %426 = vmatpush1.msra.mxu0 0.0
        %427 = vmatprep.subr.mxu0 0.0
        %428 = vmatpush1.msra.mxu0 0.0
        %429 = vmatprep.mubr.f32.mxu0 0.0
        %v430 = vand.u32 %v362, 4294901760
        %v431 = vsub.f32 %v362, %v430
        %v432 = vand.u32 %v431, 4294901760
        %v433 = vsub.f32 %v431, %v432
        %v434 = vand.u32 %v433, 4294901760
        %435 = vmatmul.mubr.f32.gmra.mrb[0].mxu0 %v434
        %v436 = vpop.f32.mrb[0].mxu0
        %v437 = vadd.f32 0.0, %v436
        %v438 = vpop.f32.mrb[0].mxu0
        %439 = vdwg.mxu0
        %440 = vmatprep.subr.mxu0 0.0
        %v441 = vand.u32 %v354, 4294901760
        %v442 = vsub.f32 %v354, %v441
        %v443 = vand.u32 %v442, 4294901760
        %v444 = vsub.f32 %v442, %v443
        %v445 = vand.u32 %v444, 4294901760
        %446 = vmatpush1.msra.mxu0 %v445
        %447 = vmatprep.subr.mxu0 0.0
        %448 = vmatpush1.msra.mxu0 0.0
        %449 = vmatprep.subr.mxu0 0.0
        %450 = vmatpush1.msra.mxu0 0.0
        %451 = vmatprep.subr.mxu0 0.0
        %452 = vmatpush1.msra.mxu0 0.0
        %453 = vmatprep.subr.mxu0 0.0
        %454 = vmatpush1.msra.mxu0 0.0
        %455 = vmatprep.subr.mxu0 0.0
        %456 = vmatpush1.msra.mxu0 0.0
        %457 = vmatprep.subr.mxu0 0.0
        %458 = vmatpush1.msra.mxu0 0.0
        %459 = vmatprep.subr.mxu0 0.0
        %460 = vmatpush1.msra.mxu0 0.0
        %461 = vmatprep.subr.mxu0 0.0
        %462 = vmatpush1.msra.mxu0 0.0
        %463 = vmatprep.subr.mxu0 0.0
        %464 = vmatpush1.msra.mxu0 0.0
        %465 = vmatprep.subr.mxu0 0.0
        %466 = vmatpush1.msra.mxu0 0.0
        %467 = vmatprep.subr.mxu0 0.0
        %468 = vmatpush1.msra.mxu0 0.0
        %469 = vmatprep.subr.mxu0 0.0
        %470 = vmatpush1.msra.mxu0 0.0
        %471 = vmatprep.subr.mxu0 0.0
        %472 = vmatpush1.msra.mxu0 0.0
        %473 = vmatprep.subr.mxu0 0.0
        %474 = vmatpush1.msra.mxu0 0.0
        %475 = vmatprep.subr.mxu0 0.0
        %476 = vmatpush1.msra.mxu0 0.0
        %477 = vmatprep.subr.mxu0 0.0
        %478 = vmatpush1.msra.mxu0 0.0
        %479 = vmatprep.subr.mxu0 0.0
        %480 = vmatpush1.msra.mxu0 0.0
        %481 = vmatprep.subr.mxu0 0.0
        %482 = vmatpush1.msra.mxu0 0.0
        %483 = vmatprep.subr.mxu0 0.0
        %484 = vmatpush1.msra.mxu0 0.0
        %485 = vmatprep.subr.mxu0 0.0
        %486 = vmatpush1.msra.mxu0 0.0
        %487 = vmatprep.subr.mxu0 0.0
        %488 = vmatpush1.msra.mxu0 0.0
        %489 = vmatprep.subr.mxu0 0.0
        %490 = vmatpush1.msra.mxu0 0.0
        %491 = vmatprep.subr.mxu0 0.0
        %492 = vmatpush1.msra.mxu0 0.0
        %493 = vmatprep.subr.mxu0 0.0
        %494 = vmatpush1.msra.mxu0 0.0
        %495 = vmatprep.subr.mxu0 0.0
        %496 = vmatpush1.msra.mxu0 0.0
        %497 = vmatprep.subr.mxu0 0.0
        %498 = vmatpush1.msra.mxu0 0.0
        %499 = vmatprep.subr.mxu0 0.0
        %500 = vmatpush1.msra.mxu0 0.0
        %501 = vmatprep.subr.mxu0 0.0
        %502 = vmatpush1.msra.mxu0 0.0
        %503 = vmatprep.subr.mxu0 0.0
        %504 = vmatpush1.msra.mxu0 0.0
        %505 = vmatprep.subr.mxu0 0.0
        %506 = vmatpush1.msra.mxu0 0.0
        %507 = vmatprep.subr.mxu0 0.0
        %508 = vmatpush1.msra.mxu0 0.0
        %509 = vmatprep.mubr.f32.mxu0 0.0
        %v510 = vand.u32 %v362, 4294901760
        %511 = vmatmul.mubr.f32.gmra.mrb[0].mxu0 %v510
        %v512 = vpop.f32.mrb[0].mxu0
        %v513 = vadd.f32 %v437, %v512
        %v514 = vpop.f32.mrb[0].mxu0
        %515 = vdwg.mxu0
        %516 = vmatprep.subr.mxu0 0.0
        %v517 = vand.u32 %v354, 4294901760
        %v518 = vsub.f32 %v354, %v517
        %519 = vmatpush1.msra.mxu0 %v518
        %520 = vmatprep.subr.mxu0 0.0
        %521 = vmatpush1.msra.mxu0 0.0
        %522 = vmatprep.subr.mxu0 0.0
        %523 = vmatpush1.msra.mxu0 0.0
        %524 = vmatprep.subr.mxu0 0.0
        %525 = vmatpush1.msra.mxu0 0.0
        %526 = vmatprep.subr.mxu0 0.0
        %527 = vmatpush1.msra.mxu0 0.0
        %528 = vmatprep.subr.mxu0 0.0
        %529 = vmatpush1.msra.mxu0 0.0
        %530 = vmatprep.subr.mxu0 0.0
        %531 = vmatpush1.msra.mxu0 0.0
        %532 = vmatprep.subr.mxu0 0.0
        %533 = vmatpush1.msra.mxu0 0.0
        %534 = vmatprep.subr.mxu0 0.0
        %535 = vmatpush1.msra.mxu0 0.0
        %536 = vmatprep.subr.mxu0 0.0
        %537 = vmatpush1.msra.mxu0 0.0
        %538 = vmatprep.subr.mxu0 0.0
        %539 = vmatpush1.msra.mxu0 0.0
        %540 = vmatprep.subr.mxu0 0.0
        %541 = vmatpush1.msra.mxu0 0.0
        %542 = vmatprep.subr.mxu0 0.0
        %543 = vmatpush1.msra.mxu0 0.0
        %544 = vmatprep.subr.mxu0 0.0
        %545 = vmatpush1.msra.mxu0 0.0
        %546 = vmatprep.subr.mxu0 0.0
        %547 = vmatpush1.msra.mxu0 0.0
        %548 = vmatprep.subr.mxu0 0.0
        %549 = vmatpush1.msra.mxu0 0.0
        %550 = vmatprep.subr.mxu0 0.0
        %551 = vmatpush1.msra.mxu0 0.0
        %552 = vmatprep.subr.mxu0 0.0
        %553 = vmatpush1.msra.mxu0 0.0
        %554 = vmatprep.subr.mxu0 0.0
        %555 = vmatpush1.msra.mxu0 0.0
        %556 = vmatprep.subr.mxu0 0.0
        %557 = vmatpush1.msra.mxu0 0.0
        %558 = vmatprep.subr.mxu0 0.0
        %559 = vmatpush1.msra.mxu0 0.0
        %560 = vmatprep.subr.mxu0 0.0
        %561 = vmatpush1.msra.mxu0 0.0
        %562 = vmatprep.subr.mxu0 0.0
        %563 = vmatpush1.msra.mxu0 0.0
        %564 = vmatprep.subr.mxu0 0.0
        %565 = vmatpush1.msra.mxu0 0.0
        %566 = vmatprep.subr.mxu0 0.0
        %567 = vmatpush1.msra.mxu0 0.0
        %568 = vmatprep.subr.mxu0 0.0
        %569 = vmatpush1.msra.mxu0 0.0
        %570 = vmatprep.subr.mxu0 0.0
        %571 = vmatpush1.msra.mxu0 0.0
        %572 = vmatprep.subr.mxu0 0.0
        %573 = vmatpush1.msra.mxu0 0.0
        %574 = vmatprep.subr.mxu0 0.0
        %575 = vmatpush1.msra.mxu0 0.0
        %576 = vmatprep.subr.mxu0 0.0
        %577 = vmatpush1.msra.mxu0 0.0
        %578 = vmatprep.subr.mxu0 0.0
        %579 = vmatpush1.msra.mxu0 0.0
        %580 = vmatprep.subr.mxu0 0.0
        %581 = vmatpush1.msra.mxu0 0.0
        %582 = vmatprep.mubr.f32.mxu0 0.0
        %v583 = vand.u32 %v362, 4294901760
        %v584 = vsub.f32 %v362, %v583
        %585 = vmatmul.mubr.f32.gmra.mrb[0].mxu0 %v584
        %v586 = vpop.f32.mrb[0].mxu0
        %v587 = vadd.f32 %v513, %v586
        %v588 = vpop.f32.mrb[0].mxu0
        %589 = vdwg.mxu0
        %590 = vmatprep.subr.mxu0 0.0
        %v591 = vand.u32 %v354, 4294901760
        %592 = vmatpush1.msra.mxu0 %v591
        %593 = vmatprep.subr.mxu0 0.0
        %594 = vmatpush1.msra.mxu0 0.0
        %595 = vmatprep.subr.mxu0 0.0
        %596 = vmatpush1.msra.mxu0 0.0
        %597 = vmatprep.subr.mxu0 0.0
        %598 = vmatpush1.msra.mxu0 0.0
        %599 = vmatprep.subr.mxu0 0.0
        %600 = vmatpush1.msra.mxu0 0.0
        %601 = vmatprep.subr.mxu0 0.0
        %602 = vmatpush1.msra.mxu0 0.0
        %603 = vmatprep.subr.mxu0 0.0
        %604 = vmatpush1.msra.mxu0 0.0
        %605 = vmatprep.subr.mxu0 0.0
        %606 = vmatpush1.msra.mxu0 0.0
        %607 = vmatprep.subr.mxu0 0.0
        %608 = vmatpush1.msra.mxu0 0.0
        %609 = vmatprep.subr.mxu0 0.0
        %610 = vmatpush1.msra.mxu0 0.0
        %611 = vmatprep.subr.mxu0 0.0
        %612 = vmatpush1.msra.mxu0 0.0
        %613 = vmatprep.subr.mxu0 0.0
        %614 = vmatpush1.msra.mxu0 0.0
        %615 = vmatprep.subr.mxu0 0.0
        %616 = vmatpush1.msra.mxu0 0.0
        %617 = vmatprep.subr.mxu0 0.0
        %618 = vmatpush1.msra.mxu0 0.0
        %619 = vmatprep.subr.mxu0 0.0
        %620 = vmatpush1.msra.mxu0 0.0
        %621 = vmatprep.subr.mxu0 0.0
        %622 = vmatpush1.msra.mxu0 0.0
        %623 = vmatprep.subr.mxu0 0.0
        %624 = vmatpush1.msra.mxu0 0.0
        %625 = vmatprep.subr.mxu0 0.0
        %626 = vmatpush1.msra.mxu0 0.0
        %627 = vmatprep.subr.mxu0 0.0
        %628 = vmatpush1.msra.mxu0 0.0
        %629 = vmatprep.subr.mxu0 0.0
        %630 = vmatpush1.msra.mxu0 0.0
        %631 = vmatprep.subr.mxu0 0.0
        %632 = vmatpush1.msra.mxu0 0.0
        %633 = vmatprep.subr.mxu0 0.0
        %634 = vmatpush1.msra.mxu0 0.0
        %635 = vmatprep.subr.mxu0 0.0
        %636 = vmatpush1.msra.mxu0 0.0
        %637 = vmatprep.subr.mxu0 0.0
        %638 = vmatpush1.msra.mxu0 0.0
        %639 = vmatprep.subr.mxu0 0.0
        %640 = vmatpush1.msra.mxu0 0.0
        %641 = vmatprep.subr.mxu0 0.0
        %642 = vmatpush1.msra.mxu0 0.0
        %643 = vmatprep.subr.mxu0 0.0
        %644 = vmatpush1.msra.mxu0 0.0
        %645 = vmatprep.subr.mxu0 0.0
        %646 = vmatpush1.msra.mxu0 0.0
        %647 = vmatprep.subr.mxu0 0.0
        %648 = vmatpush1.msra.mxu0 0.0
        %649 = vmatprep.subr.mxu0 0.0
        %650 = vmatpush1.msra.mxu0 0.0
        %651 = vmatprep.subr.mxu0 0.0
        %652 = vmatpush1.msra.mxu0 0.0
        %653 = vmatprep.subr.mxu0 0.0
        %654 = vmatpush1.msra.mxu0 0.0
        %655 = vmatprep.mubr.f32.mxu0 0.0
        %v656 = vand.u32 %v362, 4294901760
        %v657 = vsub.f32 %v362, %v656
        %v658 = vand.u32 %v657, 4294901760
        %659 = vmatmul.mubr.f32.gmra.mrb[0].mxu0 %v658
        %v660 = vpop.f32.mrb[0].mxu0
        %v661 = vadd.f32 %v587, %v660
        %v662 = vpop.f32.mrb[0].mxu0
        %663 = vdwg.mxu0
        %664 = vmatprep.subr.mxu0 0.0
        %v665 = vand.u32 %v354, 4294901760
        %v666 = vsub.f32 %v354, %v665
        %v667 = vand.u32 %v666, 4294901760
        %668 = vmatpush1.msra.mxu0 %v667
        %669 = vmatprep.subr.mxu0 0.0
        %670 = vmatpush1.msra.mxu0 0.0
        %671 = vmatprep.subr.mxu0 0.0
        %672 = vmatpush1.msra.mxu0 0.0
        %673 = vmatprep.subr.mxu0 0.0
        %674 = vmatpush1.msra.mxu0 0.0
        %675 = vmatprep.subr.mxu0 0.0
        %676 = vmatpush1.msra.mxu0 0.0
        %677 = vmatprep.subr.mxu0 0.0
        %678 = vmatpush1.msra.mxu0 0.0
        %679 = vmatprep.subr.mxu0 0.0
        %680 = vmatpush1.msra.mxu0 0.0
        %681 = vmatprep.subr.mxu0 0.0
        %682 = vmatpush1.msra.mxu0 0.0
        %683 = vmatprep.subr.mxu0 0.0
        %684 = vmatpush1.msra.mxu0 0.0
        %685 = vmatprep.subr.mxu0 0.0
        %686 = vmatpush1.msra.mxu0 0.0
        %687 = vmatprep.subr.mxu0 0.0
        %688 = vmatpush1.msra.mxu0 0.0
        %689 = vmatprep.subr.mxu0 0.0
        %690 = vmatpush1.msra.mxu0 0.0
        %691 = vmatprep.subr.mxu0 0.0
        %692 = vmatpush1.msra.mxu0 0.0
        %693 = vmatprep.subr.mxu0 0.0
        %694 = vmatpush1.msra.mxu0 0.0
        %695 = vmatprep.subr.mxu0 0.0
        %696 = vmatpush1.msra.mxu0 0.0
        %697 = vmatprep.subr.mxu0 0.0
        %698 = vmatpush1.msra.mxu0 0.0
        %699 = vmatprep.subr.mxu0 0.0
        %700 = vmatpush1.msra.mxu0 0.0
        %701 = vmatprep.subr.mxu0 0.0
        %702 = vmatpush1.msra.mxu0 0.0
        %703 = vmatprep.subr.mxu0 0.0
        %704 = vmatpush1.msra.mxu0 0.0
        %705 = vmatprep.subr.mxu0 0.0
        %706 = vmatpush1.msra.mxu0 0.0
        %707 = vmatprep.subr.mxu0 0.0
        %708 = vmatpush1.msra.mxu0 0.0
        %709 = vmatprep.subr.mxu0 0.0
        %710 = vmatpush1.msra.mxu0 0.0
        %711 = vmatprep.subr.mxu0 0.0
        %712 = vmatpush1.msra.mxu0 0.0
        %713 = vmatprep.subr.mxu0 0.0
        %714 = vmatpush1.msra.mxu0 0.0
        %715 = vmatprep.subr.mxu0 0.0
        %716 = vmatpush1.msra.mxu0 0.0
        %717 = vmatprep.subr.mxu0 0.0
        %718 = vmatpush1.msra.mxu0 0.0
        %719 = vmatprep.subr.mxu0 0.0
        %720 = vmatpush1.msra.mxu0 0.0
        %721 = vmatprep.subr.mxu0 0.0
        %722 = vmatpush1.msra.mxu0 0.0
        %723 = vmatprep.subr.mxu0 0.0
        %724 = vmatpush1.msra.mxu0 0.0
        %725 = vmatprep.subr.mxu0 0.0
        %726 = vmatpush1.msra.mxu0 0.0
        %727 = vmatprep.subr.mxu0 0.0
        %728 = vmatpush1.msra.mxu0 0.0
        %729 = vmatprep.subr.mxu0 0.0
        %730 = vmatpush1.msra.mxu0 0.0
        %731 = vmatprep.mubr.f32.mxu0 0.0
        %v732 = vand.u32 %v362, 4294901760
        %733 = vmatmul.mubr.f32.gmra.mrb[0].mxu0 %v732
        %v734 = vpop.f32.mrb[0].mxu0
        %v735 = vadd.f32 %v661, %v734
        %v736 = vpop.f32.mrb[0].mxu0
        %737 = vdwg.mxu0
        %738 = vmatprep.subr.mxu0 0.0
        %v739 = vand.u32 %v354, 4294901760
        %740 = vmatpush1.msra.mxu0 %v739
        %741 = vmatprep.subr.mxu0 0.0
        %742 = vmatpush1.msra.mxu0 0.0
        %743 = vmatprep.subr.mxu0 0.0
        %744 = vmatpush1.msra.mxu0 0.0
        %745 = vmatprep.subr.mxu0 0.0
        %746 = vmatpush1.msra.mxu0 0.0
        %747 = vmatprep.subr.mxu0 0.0
        %748 = vmatpush1.msra.mxu0 0.0
        %749 = vmatprep.subr.mxu0 0.0
        %750 = vmatpush1.msra.mxu0 0.0
        %751 = vmatprep.subr.mxu0 0.0
        %752 = vmatpush1.msra.mxu0 0.0
        %753 = vmatprep.subr.mxu0 0.0
        %754 = vmatpush1.msra.mxu0 0.0
        %755 = vmatprep.subr.mxu0 0.0
        %756 = vmatpush1.msra.mxu0 0.0
        %757 = vmatprep.subr.mxu0 0.0
        %758 = vmatpush1.msra.mxu0 0.0
        %759 = vmatprep.subr.mxu0 0.0
        %760 = vmatpush1.msra.mxu0 0.0
        %761 = vmatprep.subr.mxu0 0.0
        %762 = vmatpush1.msra.mxu0 0.0
        %763 = vmatprep.subr.mxu0 0.0
        %764 = vmatpush1.msra.mxu0 0.0
        %765 = vmatprep.subr.mxu0 0.0
        %766 = vmatpush1.msra.mxu0 0.0
        %767 = vmatprep.subr.mxu0 0.0
        %768 = vmatpush1.msra.mxu0 0.0
        %769 = vmatprep.subr.mxu0 0.0
        %770 = vmatpush1.msra.mxu0 0.0
        %771 = vmatprep.subr.mxu0 0.0
        %772 = vmatpush1.msra.mxu0 0.0
        %773 = vmatprep.subr.mxu0 0.0
        %774 = vmatpush1.msra.mxu0 0.0
        %775 = vmatprep.subr.mxu0 0.0
        %776 = vmatpush1.msra.mxu0 0.0
        %777 = vmatprep.subr.mxu0 0.0
        %778 = vmatpush1.msra.mxu0 0.0
        %779 = vmatprep.subr.mxu0 0.0
        %780 = vmatpush1.msra.mxu0 0.0
        %781 = vmatprep.subr.mxu0 0.0
        %782 = vmatpush1.msra.mxu0 0.0
        %783 = vmatprep.subr.mxu0 0.0
        %784 = vmatpush1.msra.mxu0 0.0
        %785 = vmatprep.subr.mxu0 0.0
        %786 = vmatpush1.msra.mxu0 0.0
        %787 = vmatprep.subr.mxu0 0.0
        %788 = vmatpush1.msra.mxu0 0.0
        %789 = vmatprep.subr.mxu0 0.0
        %790 = vmatpush1.msra.mxu0 0.0
        %791 = vmatprep.subr.mxu0 0.0
        %792 = vmatpush1.msra.mxu0 0.0
        %793 = vmatprep.subr.mxu0 0.0
        %794 = vmatpush1.msra.mxu0 0.0
        %795 = vmatprep.subr.mxu0 0.0
        %796 = vmatpush1.msra.mxu0 0.0
        %797 = vmatprep.subr.mxu0 0.0
        %798 = vmatpush1.msra.mxu0 0.0
        %799 = vmatprep.subr.mxu0 0.0
        %800 = vmatpush1.msra.mxu0 0.0
        %801 = vmatprep.subr.mxu0 0.0
        %802 = vmatpush1.msra.mxu0 0.0
        %803 = vmatprep.mubr.f32.mxu0 0.0
        %v804 = vand.u32 %v362, 4294901760
        %805 = vmatmul.mubr.f32.gmra.mrb[0].mxu0 %v804
        %v806 = vpop.f32.mrb[0].mxu0
        %v807 = vadd.f32 %v735, %v806
        %v808 = vpop.f32.mrb[0].mxu0
        %809 = vdwg.mxu0
        %v811 = vsel %vm360, %v351, 0
        %813 = vmatprep.subr.mxu0 0.0
        %v814 = vand.u32 %v355, 4294901760
        %815 = vmatpush1.msra.mxu0 %v814
        %816 = vmatprep.subr.mxu0 0.0
        %817 = vmatpush1.msra.mxu0 0.0
        %818 = vmatprep.subr.mxu0 0.0
        %819 = vmatpush1.msra.mxu0 0.0
        %820 = vmatprep.subr.mxu0 0.0
        %821 = vmatpush1.msra.mxu0 0.0
        %822 = vmatprep.subr.mxu0 0.0
        %823 = vmatpush1.msra.mxu0 0.0
        %824 = vmatprep.subr.mxu0 0.0
        %825 = vmatpush1.msra.mxu0 0.0
        %826 = vmatprep.subr.mxu0 0.0
        %827 = vmatpush1.msra.mxu0 0.0
        %828 = vmatprep.subr.mxu0 0.0
        %829 = vmatpush1.msra.mxu0 0.0
        %830 = vmatprep.subr.mxu0 0.0
        %831 = vmatpush1.msra.mxu0 0.0
        %832 = vmatprep.subr.mxu0 0.0
        %833 = vmatpush1.msra.mxu0 0.0
        %834 = vmatprep.subr.mxu0 0.0
        %835 = vmatpush1.msra.mxu0 0.0
        %836 = vmatprep.subr.mxu0 0.0
        %837 = vmatpush1.msra.mxu0 0.0
        %838 = vmatprep.subr.mxu0 0.0
        %839 = vmatpush1.msra.mxu0 0.0
        %840 = vmatprep.subr.mxu0 0.0
        %841 = vmatpush1.msra.mxu0 0.0
        %842 = vmatprep.subr.mxu0 0.0
        %843 = vmatpush1.msra.mxu0 0.0
        %844 = vmatprep.subr.mxu0 0.0
        %845 = vmatpush1.msra.mxu0 0.0
        %846 = vmatprep.subr.mxu0 0.0
        %847 = vmatpush1.msra.mxu0 0.0
        %848 = vmatprep.subr.mxu0 0.0
        %849 = vmatpush1.msra.mxu0 0.0
        %850 = vmatprep.subr.mxu0 0.0
        %851 = vmatpush1.msra.mxu0 0.0
        %852 = vmatprep.subr.mxu0 0.0
        %853 = vmatpush1.msra.mxu0 0.0
        %854 = vmatprep.subr.mxu0 0.0
        %855 = vmatpush1.msra.mxu0 0.0
        %856 = vmatprep.subr.mxu0 0.0
        %857 = vmatpush1.msra.mxu0 0.0
        %858 = vmatprep.subr.mxu0 0.0
        %859 = vmatpush1.msra.mxu0 0.0
        %860 = vmatprep.subr.mxu0 0.0
        %861 = vmatpush1.msra.mxu0 0.0
        %862 = vmatprep.subr.mxu0 0.0
        %863 = vmatpush1.msra.mxu0 0.0
        %864 = vmatprep.subr.mxu0 0.0
        %865 = vmatpush1.msra.mxu0 0.0
        %866 = vmatprep.subr.mxu0 0.0
        %867 = vmatpush1.msra.mxu0 0.0
        %868 = vmatprep.subr.mxu0 0.0
        %869 = vmatpush1.msra.mxu0 0.0
        %870 = vmatprep.subr.mxu0 0.0
        %871 = vmatpush1.msra.mxu0 0.0
        %872 = vmatprep.subr.mxu0 0.0
        %873 = vmatpush1.msra.mxu0 0.0
        %874 = vmatprep.subr.mxu0 0.0
        %875 = vmatpush1.msra.mxu0 0.0
        %876 = vmatprep.subr.mxu0 0.0
        %877 = vmatpush1.msra.mxu0 0.0
        %878 = vmatprep.mubr.f32.mxu0 0.0
        %v879 = vand.u32 %v811, 4294901760
        %v880 = vsub.f32 %v811, %v879
        %v881 = vand.u32 %v880, 4294901760
        %v882 = vsub.f32 %v880, %v881
        %v883 = vand.u32 %v882, 4294901760
        %884 = vmatmul.mubr.f32.gmra.mrb[0].mxu0 %v883
        %v885 = vpop.f32.mrb[0].mxu0
        %v886 = vadd.f32 0.0, %v885
        %v887 = vpop.f32.mrb[0].mxu0
        %888 = vdwg.mxu0
        %889 = vmatprep.subr.mxu0 0.0
        %v890 = vand.u32 %v355, 4294901760
        %v891 = vsub.f32 %v355, %v890
        %v892 = vand.u32 %v891, 4294901760
        %v893 = vsub.f32 %v891, %v892
        %v894 = vand.u32 %v893, 4294901760
        %895 = vmatpush1.msra.mxu0 %v894
        %896 = vmatprep.subr.mxu0 0.0
        %897 = vmatpush1.msra.mxu0 0.0
        %898 = vmatprep.subr.mxu0 0.0
        %899 = vmatpush1.msra.mxu0 0.0
        %900 = vmatprep.subr.mxu0 0.0
        %901 = vmatpush1.msra.mxu0 0.0
        %902 = vmatprep.subr.mxu0 0.0
        %903 = vmatpush1.msra.mxu0 0.0
        %904 = vmatprep.subr.mxu0 0.0
        %905 = vmatpush1.msra.mxu0 0.0
        %906 = vmatprep.subr.mxu0 0.0
        %907 = vmatpush1.msra.mxu0 0.0
        %908 = vmatprep.subr.mxu0 0.0
        %909 = vmatpush1.msra.mxu0 0.0
        %910 = vmatprep.subr.mxu0 0.0
        %911 = vmatpush1.msra.mxu0 0.0
        %912 = vmatprep.subr.mxu0 0.0
        %913 = vmatpush1.msra.mxu0 0.0
        %914 = vmatprep.subr.mxu0 0.0
        %915 = vmatpush1.msra.mxu0 0.0
        %916 = vmatprep.subr.mxu0 0.0
        %917 = vmatpush1.msra.mxu0 0.0
        %918 = vmatprep.subr.mxu0 0.0
        %919 = vmatpush1.msra.mxu0 0.0
        %920 = vmatprep.subr.mxu0 0.0
        %921 = vmatpush1.msra.mxu0 0.0
        %922 = vmatprep.subr.mxu0 0.0
        %923 = vmatpush1.msra.mxu0 0.0
        %924 = vmatprep.subr.mxu0 0.0
        %925 = vmatpush1.msra.mxu0 0.0
        %926 = vmatprep.subr.mxu0 0.0
        %927 = vmatpush1.msra.mxu0 0.0
        %928 = vmatprep.subr.mxu0 0.0
        %929 = vmatpush1.msra.mxu0 0.0
        %930 = vmatprep.subr.mxu0 0.0
        %931 = vmatpush1.msra.mxu0 0.0
        %932 = vmatprep.subr.mxu0 0.0
        %933 = vmatpush1.msra.mxu0 0.0
        %934 = vmatprep.subr.mxu0 0.0
        %935 = vmatpush1.msra.mxu0 0.0
        %936 = vmatprep.subr.mxu0 0.0
        %937 = vmatpush1.msra.mxu0 0.0
        %938 = vmatprep.subr.mxu0 0.0
        %939 = vmatpush1.msra.mxu0 0.0
        %940 = vmatprep.subr.mxu0 0.0
        %941 = vmatpush1.msra.mxu0 0.0
        %942 = vmatprep.subr.mxu0 0.0
        %943 = vmatpush1.msra.mxu0 0.0
        %944 = vmatprep.subr.mxu0 0.0
        %945 = vmatpush1.msra.mxu0 0.0
        %946 = vmatprep.subr.mxu0 0.0
        %947 = vmatpush1.msra.mxu0 0.0
        %948 = vmatprep.subr.mxu0 0.0
        %949 = vmatpush1.msra.mxu0 0.0
        %950 = vmatprep.subr.mxu0 0.0
        %951 = vmatpush1.msra.mxu0 0.0
        %952 = vmatprep.subr.mxu0 0.0
        %953 = vmatpush1.msra.mxu0 0.0
        %954 = vmatprep.subr.mxu0 0.0
        %955 = vmatpush1.msra.mxu0 0.0
        %956 = vmatprep.subr.mxu0 0.0
        %957 = vmatpush1.msra.mxu0 0.0
        %958 = vmatprep.mubr.f32.mxu0 0.0
        %v959 = vand.u32 %v811, 4294901760
        %960 = vmatmul.mubr.f32.gmra.mrb[0].mxu0 %v959
        %v961 = vpop.f32.mrb[0].mxu0
        %v962 = vadd.f32 %v886, %v961
        %v963 = vpop.f32.mrb[0].mxu0
        %964 = vdwg.mxu0
        %965 = vmatprep.subr.mxu0 0.0
        %v966 = vand.u32 %v355, 4294901760
        %v967 = vsub.f32 %v355, %v966
        %968 = vmatpush1.msra.mxu0 %v967
        %969 = vmatprep.subr.mxu0 0.0
        %970 = vmatpush1.msra.mxu0 0.0
        %971 = vmatprep.subr.mxu0 0.0
        %972 = vmatpush1.msra.mxu0 0.0
        %973 = vmatprep.subr.mxu0 0.0
        %974 = vmatpush1.msra.mxu0 0.0
        %975 = vmatprep.subr.mxu0 0.0
        %976 = vmatpush1.msra.mxu0 0.0
        %977 = vmatprep.subr.mxu0 0.0
        %978 = vmatpush1.msra.mxu0 0.0
        %979 = vmatprep.subr.mxu0 0.0
        %980 = vmatpush1.msra.mxu0 0.0
        %981 = vmatprep.subr.mxu0 0.0
        %982 = vmatpush1.msra.mxu0 0.0
        %983 = vmatprep.subr.mxu0 0.0
        %984 = vmatpush1.msra.mxu0 0.0
        %985 = vmatprep.subr.mxu0 0.0
        %986 = vmatpush1.msra.mxu0 0.0
        %987 = vmatprep.subr.mxu0 0.0
        %988 = vmatpush1.msra.mxu0 0.0
        %989 = vmatprep.subr.mxu0 0.0
        %990 = vmatpush1.msra.mxu0 0.0
        %991 = vmatprep.subr.mxu0 0.0
        %992 = vmatpush1.msra.mxu0 0.0
        %993 = vmatprep.subr.mxu0 0.0
        %994 = vmatpush1.msra.mxu0 0.0
        %995 = vmatprep.subr.mxu0 0.0
        %996 = vmatpush1.msra.mxu0 0.0
        %997 = vmatprep.subr.mxu0 0.0
        %998 = vmatpush1.msra.mxu0 0.0
        %999 = vmatprep.subr.mxu0 0.0
        %1000 = vmatpush1.msra.mxu0 0.0
        %1001 = vmatprep.subr.mxu0 0.0
        %1002 = vmatpush1.msra.mxu0 0.0
        %1003 = vmatprep.subr.mxu0 0.0
        %1004 = vmatpush1.msra.mxu0 0.0
        %1005 = vmatprep.subr.mxu0 0.0
        %1006 = vmatpush1.msra.mxu0 0.0
        %1007 = vmatprep.subr.mxu0 0.0
        %1008 = vmatpush1.msra.mxu0 0.0
        %1009 = vmatprep.subr.mxu0 0.0
        %1010 = vmatpush1.msra.mxu0 0.0
        %1011 = vmatprep.subr.mxu0 0.0
        %1012 = vmatpush1.msra.mxu0 0.0
        %1013 = vmatprep.subr.mxu0 0.0
        %1014 = vmatpush1.msra.mxu0 0.0
        %1015 = vmatprep.subr.mxu0 0.0
        %1016 = vmatpush1.msra.mxu0 0.0
        %1017 = vmatprep.subr.mxu0 0.0
        %1018 = vmatpush1.msra.mxu0 0.0
        %1019 = vmatprep.subr.mxu0 0.0
        %1020 = vmatpush1.msra.mxu0 0.0
        %1021 = vmatprep.subr.mxu0 0.0
        %1022 = vmatpush1.msra.mxu0 0.0
        %1023 = vmatprep.subr.mxu0 0.0
        %1024 = vmatpush1.msra.mxu0 0.0
        %1025 = vmatprep.subr.mxu0 0.0
        %1026 = vmatpush1.msra.mxu0 0.0
        %1027 = vmatprep.subr.mxu0 0.0
        %1028 = vmatpush1.msra.mxu0 0.0
        %1029 = vmatprep.subr.mxu0 0.0
        %1030 = vmatpush1.msra.mxu0 0.0
        %1031 = vmatprep.mubr.f32.mxu0 0.0
        %v1032 = vand.u32 %v811, 4294901760
        %v1033 = vsub.f32 %v811, %v1032
        %1034 = vmatmul.mubr.f32.gmra.mrb[0].mxu0 %v1033
        %v1035 = vpop.f32.mrb[0].mxu0
        %v1036 = vadd.f32 %v962, %v1035
        %v1037 = vpop.f32.mrb[0].mxu0
        %1038 = vdwg.mxu0
        %1039 = vmatprep.subr.mxu0 0.0
        %v1040 = vand.u32 %v355, 4294901760
        %1041 = vmatpush1.msra.mxu0 %v1040
        %1042 = vmatprep.subr.mxu0 0.0
        %1043 = vmatpush1.msra.mxu0 0.0
        %1044 = vmatprep.subr.mxu0 0.0
        %1045 = vmatpush1.msra.mxu0 0.0
        %1046 = vmatprep.subr.mxu0 0.0
        %1047 = vmatpush1.msra.mxu0 0.0
        %1048 = vmatprep.subr.mxu0 0.0
        %1049 = vmatpush1.msra.mxu0 0.0
        %1050 = vmatprep.subr.mxu0 0.0
        %1051 = vmatpush1.msra.mxu0 0.0
        %1052 = vmatprep.subr.mxu0 0.0
        %1053 = vmatpush1.msra.mxu0 0.0
        %1054 = vmatprep.subr.mxu0 0.0
        %1055 = vmatpush1.msra.mxu0 0.0
        %1056 = vmatprep.subr.mxu0 0.0
        %1057 = vmatpush1.msra.mxu0 0.0
        %1058 = vmatprep.subr.mxu0 0.0
        %1059 = vmatpush1.msra.mxu0 0.0
        %1060 = vmatprep.subr.mxu0 0.0
        %1061 = vmatpush1.msra.mxu0 0.0
        %1062 = vmatprep.subr.mxu0 0.0
        %1063 = vmatpush1.msra.mxu0 0.0
        %1064 = vmatprep.subr.mxu0 0.0
        %1065 = vmatpush1.msra.mxu0 0.0
        %1066 = vmatprep.subr.mxu0 0.0
        %1067 = vmatpush1.msra.mxu0 0.0
        %1068 = vmatprep.subr.mxu0 0.0
        %1069 = vmatpush1.msra.mxu0 0.0
        %1070 = vmatprep.subr.mxu0 0.0
        %1071 = vmatpush1.msra.mxu0 0.0
        %1072 = vmatprep.subr.mxu0 0.0
        %1073 = vmatpush1.msra.mxu0 0.0
        %1074 = vmatprep.subr.mxu0 0.0
        %1075 = vmatpush1.msra.mxu0 0.0
        %1076 = vmatprep.subr.mxu0 0.0
        %1077 = vmatpush1.msra.mxu0 0.0
        %1078 = vmatprep.subr.mxu0 0.0
        %1079 = vmatpush1.msra.mxu0 0.0
        %1080 = vmatprep.subr.mxu0 0.0
        %1081 = vmatpush1.msra.mxu0 0.0
        %1082 = vmatprep.subr.mxu0 0.0
        %1083 = vmatpush1.msra.mxu0 0.0
        %1084 = vmatprep.subr.mxu0 0.0
        %1085 = vmatpush1.msra.mxu0 0.0
        %1086 = vmatprep.subr.mxu0 0.0
        %1087 = vmatpush1.msra.mxu0 0.0
        %1088 = vmatprep.subr.mxu0 0.0
        %1089 = vmatpush1.msra.mxu0 0.0
        %1090 = vmatprep.subr.mxu0 0.0
        %1091 = vmatpush1.msra.mxu0 0.0
        %1092 = vmatprep.subr.mxu0 0.0
        %1093 = vmatpush1.msra.mxu0 0.0
        %1094 = vmatprep.subr.mxu0 0.0
        %1095 = vmatpush1.msra.mxu0 0.0
        %1096 = vmatprep.subr.mxu0 0.0
        %1097 = vmatpush1.msra.mxu0 0.0
        %1098 = vmatprep.subr.mxu0 0.0
        %1099 = vmatpush1.msra.mxu0 0.0
        %1100 = vmatprep.subr.mxu0 0.0
        %1101 = vmatpush1.msra.mxu0 0.0
        %1102 = vmatprep.subr.mxu0 0.0
        %1103 = vmatpush1.msra.mxu0 0.0
        %1104 = vmatprep.mubr.f32.mxu0 0.0
        %v1105 = vand.u32 %v811, 4294901760
        %v1106 = vsub.f32 %v811, %v1105
        %v1107 = vand.u32 %v1106, 4294901760
        %1108 = vmatmul.mubr.f32.gmra.mrb[0].mxu0 %v1107
        %v1109 = vpop.f32.mrb[0].mxu0
        %v1110 = vadd.f32 %v1036, %v1109
        %v1111 = vpop.f32.mrb[0].mxu0
        %1112 = vdwg.mxu0
        %1113 = vmatprep.subr.mxu0 0.0
        %v1114 = vand.u32 %v355, 4294901760
        %v1115 = vsub.f32 %v355, %v1114
        %v1116 = vand.u32 %v1115, 4294901760
        %1117 = vmatpush1.msra.mxu0 %v1116
        %1118 = vmatprep.subr.mxu0 0.0
        %1119 = vmatpush1.msra.mxu0 0.0
        %1120 = vmatprep.subr.mxu0 0.0
        %1121 = vmatpush1.msra.mxu0 0.0
        %1122 = vmatprep.subr.mxu0 0.0
        %1123 = vmatpush1.msra.mxu0 0.0
        %1124 = vmatprep.subr.mxu0 0.0
        %1125 = vmatpush1.msra.mxu0 0.0
        %1126 = vmatprep.subr.mxu0 0.0
        %1127 = vmatpush1.msra.mxu0 0.0
        %1128 = vmatprep.subr.mxu0 0.0
        %1129 = vmatpush1.msra.mxu0 0.0
        %1130 = vmatprep.subr.mxu0 0.0
        %1131 = vmatpush1.msra.mxu0 0.0
        %1132 = vmatprep.subr.mxu0 0.0
        %1133 = vmatpush1.msra.mxu0 0.0
        %1134 = vmatprep.subr.mxu0 0.0
        %1135 = vmatpush1.msra.mxu0 0.0
        %1136 = vmatprep.subr.mxu0 0.0
        %1137 = vmatpush1.msra.mxu0 0.0
        %1138 = vmatprep.subr.mxu0 0.0
        %1139 = vmatpush1.msra.mxu0 0.0
        %1140 = vmatprep.subr.mxu0 0.0
        %1141 = vmatpush1.msra.mxu0 0.0
        %1142 = vmatprep.subr.mxu0 0.0
        %1143 = vmatpush1.msra.mxu0 0.0
        %1144 = vmatprep.subr.mxu0 0.0
        %1145 = vmatpush1.msra.mxu0 0.0
        %1146 = vmatprep.subr.mxu0 0.0
        %1147 = vmatpush1.msra.mxu0 0.0
        %1148 = vmatprep.subr.mxu0 0.0
        %1149 = vmatpush1.msra.mxu0 0.0
        %1150 = vmatprep.subr.mxu0 0.0
        %1151 = vmatpush1.msra.mxu0 0.0
        %1152 = vmatprep.subr.mxu0 0.0
        %1153 = vmatpush1.msra.mxu0 0.0
        %1154 = vmatprep.subr.mxu0 0.0
        %1155 = vmatpush1.msra.mxu0 0.0
        %1156 = vmatprep.subr.mxu0 0.0
        %1157 = vmatpush1.msra.mxu0 0.0
        %1158 = vmatprep.subr.mxu0 0.0
        %1159 = vmatpush1.msra.mxu0 0.0
        %1160 = vmatprep.subr.mxu0 0.0
        %1161 = vmatpush1.msra.mxu0 0.0
        %1162 = vmatprep.subr.mxu0 0.0
        %1163 = vmatpush1.msra.mxu0 0.0
        %1164 = vmatprep.subr.mxu0 0.0
        %1165 = vmatpush1.msra.mxu0 0.0
        %1166 = vmatprep.subr.mxu0 0.0
        %1167 = vmatpush1.msra.mxu0 0.0
        %1168 = vmatprep.subr.mxu0 0.0
        %1169 = vmatpush1.msra.mxu0 0.0
        %1170 = vmatprep.subr.mxu0 0.0
        %1171 = vmatpush1.msra.mxu0 0.0
        %1172 = vmatprep.subr.mxu0 0.0
        %1173 = vmatpush1.msra.mxu0 0.0
        %1174 = vmatprep.subr.mxu0 0.0
        %1175 = vmatpush1.msra.mxu0 0.0
        %1176 = vmatprep.subr.mxu0 0.0
        %1177 = vmatpush1.msra.mxu0 0.0
        %1178 = vmatprep.subr.mxu0 0.0
        %1179 = vmatpush1.msra.mxu0 0.0
        %1180 = vmatprep.mubr.f32.mxu0 0.0
        %v1181 = vand.u32 %v811, 4294901760
        %1182 = vmatmul.mubr.f32.gmra.mrb[0].mxu0 %v1181
        %v1183 = vpop.f32.mrb[0].mxu0
        %v1184 = vadd.f32 %v1110, %v1183
        %v1185 = vpop.f32.mrb[0].mxu0
        %1186 = vdwg.mxu0
        %1187 = vmatprep.subr.mxu0 0.0
        %v1188 = vand.u32 %v355, 4294901760
        %1189 = vmatpush1.msra.mxu0 %v1188
        %1190 = vmatprep.subr.mxu0 0.0
        %1191 = vmatpush1.msra.mxu0 0.0
        %1192 = vmatprep.subr.mxu0 0.0
        %1193 = vmatpush1.msra.mxu0 0.0
        %1194 = vmatprep.subr.mxu0 0.0
        %1195 = vmatpush1.msra.mxu0 0.0
        %1196 = vmatprep.subr.mxu0 0.0
        %1197 = vmatpush1.msra.mxu0 0.0
        %1198 = vmatprep.subr.mxu0 0.0
        %1199 = vmatpush1.msra.mxu0 0.0
        %1200 = vmatprep.subr.mxu0 0.0
        %1201 = vmatpush1.msra.mxu0 0.0
        %1202 = vmatprep.subr.mxu0 0.0
        %1203 = vmatpush1.msra.mxu0 0.0
        %1204 = vmatprep.subr.mxu0 0.0
        %1205 = vmatpush1.msra.mxu0 0.0
        %1206 = vmatprep.subr.mxu0 0.0
        %1207 = vmatpush1.msra.mxu0 0.0
        %1208 = vmatprep.subr.mxu0 0.0
        %1209 = vmatpush1.msra.mxu0 0.0
        %1210 = vmatprep.subr.mxu0 0.0
        %1211 = vmatpush1.msra.mxu0 0.0
        %1212 = vmatprep.subr.mxu0 0.0
        %1213 = vmatpush1.msra.mxu0 0.0
        %1214 = vmatprep.subr.mxu0 0.0
        %1215 = vmatpush1.msra.mxu0 0.0
        %1216 = vmatprep.subr.mxu0 0.0
        %1217 = vmatpush1.msra.mxu0 0.0
        %1218 = vmatprep.subr.mxu0 0.0
        %1219 = vmatpush1.msra.mxu0 0.0
        %1220 = vmatprep.subr.mxu0 0.0
        %1221 = vmatpush1.msra.mxu0 0.0
        %1222 = vmatprep.subr.mxu0 0.0
        %1223 = vmatpush1.msra.mxu0 0.0
        %1224 = vmatprep.subr.mxu0 0.0
        %1225 = vmatpush1.msra.mxu0 0.0
        %1226 = vmatprep.subr.mxu0 0.0
        %1227 = vmatpush1.msra.mxu0 0.0
        %1228 = vmatprep.subr.mxu0 0.0
        %1229 = vmatpush1.msra.mxu0 0.0
        %1230 = vmatprep.subr.mxu0 0.0
        %1231 = vmatpush1.msra.mxu0 0.0
        %1232 = vmatprep.subr.mxu0 0.0
        %1233 = vmatpush1.msra.mxu0 0.0
        %1234 = vmatprep.subr.mxu0 0.0
        %1235 = vmatpush1.msra.mxu0 0.0
        %1236 = vmatprep.subr.mxu0 0.0
        %1237 = vmatpush1.msra.mxu0 0.0
        %1238 = vmatprep.subr.mxu0 0.0
        %1239 = vmatpush1.msra.mxu0 0.0
        %1240 = vmatprep.subr.mxu0 0.0
        %1241 = vmatpush1.msra.mxu0 0.0
        %1242 = vmatprep.subr.mxu0 0.0
        %1243 = vmatpush1.msra.mxu0 0.0
        %1244 = vmatprep.subr.mxu0 0.0
        %1245 = vmatpush1.msra.mxu0 0.0
        %1246 = vmatprep.subr.mxu0 0.0
        %1247 = vmatpush1.msra.mxu0 0.0
        %1248 = vmatprep.subr.mxu0 0.0
        %1249 = vmatpush1.msra.mxu0 0.0
        %1250 = vmatprep.subr.mxu0 0.0
        %1251 = vmatpush1.msra.mxu0 0.0
        %1252 = vmatprep.mubr.f32.mxu0 0.0
        %v1253 = vand.u32 %v811, 4294901760
        %1254 = vmatmul.mubr.f32.gmra.mrb[0].mxu0 %v1253
        %v1255 = vpop.f32.mrb[0].mxu0
        %v1256 = vadd.f32 %v1184, %v1255
        %v1257 = vpop.f32.mrb[0].mxu0
        %1258 = vdwg.mxu0
        %v1259 = vadd.f32 %v358, %v807
        %v1260 = vadd.f32 %v359, %v1256
        %vm1261 = vcmask 253952
        %1262 = vst.msk [vmem:[#allocation2] sm:$0x1] %vm1261, %v1259
        %1263 = vst.msk [vmem:[#allocation2 + $0x1] sm:$0x1] %vm1261, %v1260
        %v1264 = vld [vmem:[#allocation3] sm:$0x1]
        %v1265 = vld [vmem:[#allocation3 + $0x1] sm:$0x1]
        %v1267 = vsel %vm360, %v352, 0
        %1269 = vmatprep.subr.mxu0 0.0
        %v1270 = vand.u32 %v356, 4294901760
        %1271 = vmatpush1.msra.mxu0 %v1270
        %1272 = vmatprep.subr.mxu0 0.0
        %1273 = vmatpush1.msra.mxu0 0.0
        %1274 = vmatprep.subr.mxu0 0.0
        %1275 = vmatpush1.msra.mxu0 0.0
        %1276 = vmatprep.subr.mxu0 0.0
        %1277 = vmatpush1.msra.mxu0 0.0
        %1278 = vmatprep.subr.mxu0 0.0
        %1279 = vmatpush1.msra.mxu0 0.0
        %1280 = vmatprep.subr.mxu0 0.0
        %1281 = vmatpush1.msra.mxu0 0.0
        %1282 = vmatprep.subr.mxu0 0.0
        %1283 = vmatpush1.msra.mxu0 0.0
        %1284 = vmatprep.subr.mxu0 0.0
        %1285 = vmatpush1.msra.mxu0 0.0
        %1286 = vmatprep.subr.mxu0 0.0
        %1287 = vmatpush1.msra.mxu0 0.0
        %1288 = vmatprep.subr.mxu0 0.0
        %1289 = vmatpush1.msra.mxu0 0.0
        %1290 = vmatprep.subr.mxu0 0.0
        %1291 = vmatpush1.msra.mxu0 0.0
        %1292 = vmatprep.subr.mxu0 0.0
        %1293 = vmatpush1.msra.mxu0 0.0
        %1294 = vmatprep.subr.mxu0 0.0
        %1295 = vmatpush1.msra.mxu0 0.0
        %1296 = vmatprep.subr.mxu0 0.0
        %1297 = vmatpush1.msra.mxu0 0.0
        %1298 = vmatprep.subr.mxu0 0.0
        %1299 = vmatpush1.msra.mxu0 0.0
        %1300 = vmatprep.subr.mxu0 0.0
        %1301 = vmatpush1.msra.mxu0 0.0
        %1302 = vmatprep.subr.mxu0 0.0
        %1303 = vmatpush1.msra.mxu0 0.0
        %1304 = vmatprep.subr.mxu0 0.0
        %1305 = vmatpush1.msra.mxu0 0.0
        %1306 = vmatprep.subr.mxu0 0.0
        %1307 = vmatpush1.msra.mxu0 0.0
        %1308 = vmatprep.subr.mxu0 0.0
        %1309 = vmatpush1.msra.mxu0 0.0
        %1310 = vmatprep.subr.mxu0 0.0
        %1311 = vmatpush1.msra.mxu0 0.0
        %1312 = vmatprep.subr.mxu0 0.0
        %1313 = vmatpush1.msra.mxu0 0.0
        %1314 = vmatprep.subr.mxu0 0.0
        %1315 = vmatpush1.msra.mxu0 0.0
        %1316 = vmatprep.subr.mxu0 0.0
        %1317 = vmatpush1.msra.mxu0 0.0
        %1318 = vmatprep.subr.mxu0 0.0
        %1319 = vmatpush1.msra.mxu0 0.0
        %1320 = vmatprep.subr.mxu0 0.0
        %1321 = vmatpush1.msra.mxu0 0.0
        %1322 = vmatprep.subr.mxu0 0.0
        %1323 = vmatpush1.msra.mxu0 0.0
        %1324 = vmatprep.subr.mxu0 0.0
        %1325 = vmatpush1.msra.mxu0 0.0
        %1326 = vmatprep.subr.mxu0 0.0
        %1327 = vmatpush1.msra.mxu0 0.0
        %1328 = vmatprep.subr.mxu0 0.0
        %1329 = vmatpush1.msra.mxu0 0.0
        %1330 = vmatprep.subr.mxu0 0.0
        %1331 = vmatpush1.msra.mxu0 0.0
        %1332 = vmatprep.subr.mxu0 0.0
        %1333 = vmatpush1.msra.mxu0 0.0
        %1334 = vmatprep.mubr.f32.mxu0 0.0
        %v1335 = vand.u32 %v1267, 4294901760
        %v1336 = vsub.f32 %v1267, %v1335
        %v1337 = vand.u32 %v1336, 4294901760
        %v1338 = vsub.f32 %v1336, %v1337
        %v1339 = vand.u32 %v1338, 4294901760
        %1340 = vmatmul.mubr.f32.gmra.mrb[0].mxu0 %v1339
        %v1341 = vpop.f32.mrb[0].mxu0
        %v1342 = vadd.f32 0.0, %v1341
        %v1343 = vpop.f32.mrb[0].mxu0
        %1344 = vdwg.mxu0
        %1345 = vmatprep.subr.mxu0 0.0
        %v1346 = vand.u32 %v356, 4294901760
        %v1347 = vsub.f32 %v356, %v1346
        %v1348 = vand.u32 %v1347, 4294901760
        %v1349 = vsub.f32 %v1347, %v1348
        %v1350 = vand.u32 %v1349, 4294901760
        %1351 = vmatpush1.msra.mxu0 %v1350
        %1352 = vmatprep.subr.mxu0 0.0
        %1353 = vmatpush1.msra.mxu0 0.0
        %1354 = vmatprep.subr.mxu0 0.0
        %1355 = vmatpush1.msra.mxu0 0.0
        %1356 = vmatprep.subr.mxu0 0.0
        %1357 = vmatpush1.msra.mxu0 0.0
        %1358 = vmatprep.subr.mxu0 0.0
        %1359 = vmatpush1.msra.mxu0 0.0
        %1360 = vmatprep.subr.mxu0 0.0
        %1361 = vmatpush1.msra.mxu0 0.0
        %1362 = vmatprep.subr.mxu0 0.0
        %1363 = vmatpush1.msra.mxu0 0.0
        %1364 = vmatprep.subr.mxu0 0.0
        %1365 = vmatpush1.msra.mxu0 0.0
        %1366 = vmatprep.subr.mxu0 0.0
        %1367 = vmatpush1.msra.mxu0 0.0
        %1368 = vmatprep.subr.mxu0 0.0
        %1369 = vmatpush1.msra.mxu0 0.0
        %1370 = vmatprep.subr.mxu0 0.0
        %1371 = vmatpush1.msra.mxu0 0.0
        %1372 = vmatprep.subr.mxu0 0.0
        %1373 = vmatpush1.msra.mxu0 0.0
        %1374 = vmatprep.subr.mxu0 0.0
        %1375 = vmatpush1.msra.mxu0 0.0
        %1376 = vmatprep.subr.mxu0 0.0
        %1377 = vmatpush1.msra.mxu0 0.0
        %1378 = vmatprep.subr.mxu0 0.0
        %1379 = vmatpush1.msra.mxu0 0.0
        %1380 = vmatprep.subr.mxu0 0.0
        %1381 = vmatpush1.msra.mxu0 0.0
        %1382 = vmatprep.subr.mxu0 0.0
        %1383 = vmatpush1.msra.mxu0 0.0
        %1384 = vmatprep.subr.mxu0 0.0
        %1385 = vmatpush1.msra.mxu0 0.0
        %1386 = vmatprep.subr.mxu0 0.0
        %1387 = vmatpush1.msra.mxu0 0.0
        %1388 = vmatprep.subr.mxu0 0.0
        %1389 = vmatpush1.msra.mxu0 0.0
        %1390 = vmatprep.subr.mxu0 0.0
        %1391 = vmatpush1.msra.mxu0 0.0
        %1392 = vmatprep.subr.mxu0 0.0
        %1393 = vmatpush1.msra.mxu0 0.0
        %1394 = vmatprep.subr.mxu0 0.0
        %1395 = vmatpush1.msra.mxu0 0.0
        %1396 = vmatprep.subr.mxu0 0.0
        %1397 = vmatpush1.msra.mxu0 0.0
        %1398 = vmatprep.subr.mxu0 0.0
        %1399 = vmatpush1.msra.mxu0 0.0
        %1400 = vmatprep.subr.mxu0 0.0
        %1401 = vmatpush1.msra.mxu0 0.0
        %1402 = vmatprep.subr.mxu0 0.0
        %1403 = vmatpush1.msra.mxu0 0.0
        %1404 = vmatprep.subr.mxu0 0.0
        %1405 = vmatpush1.msra.mxu0 0.0
        %1406 = vmatprep.subr.mxu0 0.0
        %1407 = vmatpush1.msra.mxu0 0.0
        %1408 = vmatprep.subr.mxu0 0.0
        %1409 = vmatpush1.msra.mxu0 0.0
        %1410 = vmatprep.subr.mxu0 0.0
        %1411 = vmatpush1.msra.mxu0 0.0
        %1412 = vmatprep.subr.mxu0 0.0
        %1413 = vmatpush1.msra.mxu0 0.0
        %1414 = vmatprep.mubr.f32.mxu0 0.0
        %v1415 = vand.u32 %v1267, 4294901760
        %1416 = vmatmul.mubr.f32.gmra.mrb[0].mxu0 %v1415
        %v1417 = vpop.f32.mrb[0].mxu0
        %v1418 = vadd.f32 %v1342, %v1417
        %v1419 = vpop.f32.mrb[0].mxu0
        %1420 = vdwg.mxu0
        %1421 = vmatprep.subr.mxu0 0.0
        %v1422 = vand.u32 %v356, 4294901760
        %v1423 = vsub.f32 %v356, %v1422
        %1424 = vmatpush1.msra.mxu0 %v1423
        %1425 = vmatprep.subr.mxu0 0.0
        %1426 = vmatpush1.msra.mxu0 0.0
        %1427 = vmatprep.subr.mxu0 0.0
        %1428 = vmatpush1.msra.mxu0 0.0
        %1429 = vmatprep.subr.mxu0 0.0
        %1430 = vmatpush1.msra.mxu0 0.0
        %1431 = vmatprep.subr.mxu0 0.0
        %1432 = vmatpush1.msra.mxu0 0.0
        %1433 = vmatprep.subr.mxu0 0.0
        %1434 = vmatpush1.msra.mxu0 0.0
        %1435 = vmatprep.subr.mxu0 0.0
        %1436 = vmatpush1.msra.mxu0 0.0
        %1437 = vmatprep.subr.mxu0 0.0
        %1438 = vmatpush1.msra.mxu0 0.0
        %1439 = vmatprep.subr.mxu0 0.0
        %1440 = vmatpush1.msra.mxu0 0.0
        %1441 = vmatprep.subr.mxu0 0.0
        %1442 = vmatpush1.msra.mxu0 0.0
        %1443 = vmatprep.subr.mxu0 0.0
        %1444 = vmatpush1.msra.mxu0 0.0
        %1445 = vmatprep.subr.mxu0 0.0
        %1446 = vmatpush1.msra.mxu0 0.0
        %1447 = vmatprep.subr.mxu0 0.0
        %1448 = vmatpush1.msra.mxu0 0.0
        %1449 = vmatprep.subr.mxu0 0.0
        %1450 = vmatpush1.msra.mxu0 0.0
        %1451 = vmatprep.subr.mxu0 0.0
        %1452 = vmatpush1.msra.mxu0 0.0
        %1453 = vmatprep.subr.mxu0 0.0
        %1454 = vmatpush1.msra.mxu0 0.0
        %1455 = vmatprep.subr.mxu0 0.0
        %1456 = vmatpush1.msra.mxu0 0.0
        %1457 = vmatprep.subr.mxu0 0.0
        %1458 = vmatpush1.msra.mxu0 0.0
        %1459 = vmatprep.subr.mxu0 0.0
        %1460 = vmatpush1.msra.mxu0 0.0
        %1461 = vmatprep.subr.mxu0 0.0
        %1462 = vmatpush1.msra.mxu0 0.0
        %1463 = vmatprep.subr.mxu0 0.0
        %1464 = vmatpush1.msra.mxu0 0.0
        %1465 = vmatprep.subr.mxu0 0.0
        %1466 = vmatpush1.msra.mxu0 0.0
        %1467 = vmatprep.subr.mxu0 0.0
        %1468 = vmatpush1.msra.mxu0 0.0
        %1469 = vmatprep.subr.mxu0 0.0
        %1470 = vmatpush1.msra.mxu0 0.0
        %1471 = vmatprep.subr.mxu0 0.0
        %1472 = vmatpush1.msra.mxu0 0.0
        %1473 = vmatprep.subr.mxu0 0.0
        %1474 = vmatpush1.msra.mxu0 0.0
        %1475 = vmatprep.subr.mxu0 0.0
        %1476 = vmatpush1.msra.mxu0 0.0
        %1477 = vmatprep.subr.mxu0 0.0
        %1478 = vmatpush1.msra.mxu0 0.0
        %1479 = vmatprep.subr.mxu0 0.0
        %1480 = vmatpush1.msra.mxu0 0.0
        %1481 = vmatprep.subr.mxu0 0.0
        %1482 = vmatpush1.msra.mxu0 0.0
        %1483 = vmatprep.subr.mxu0 0.0
        %1484 = vmatpush1.msra.mxu0 0.0
        %1485 = vmatprep.subr.mxu0 0.0
        %1486 = vmatpush1.msra.mxu0 0.0
        %1487 = vmatprep.mubr.f32.mxu0 0.0
        %v1488 = vand.u32 %v1267, 4294901760
        %v1489 = vsub.f32 %v1267, %v1488
        %1490 = vmatmul.mubr.f32.gmra.mrb[0].mxu0 %v1489
        %v1491 = vpop.f32.mrb[0].mxu0
        %v1492 = vadd.f32 %v1418, %v1491
        %v1493 = vpop.f32.mrb[0].mxu0
        %1494 = vdwg.mxu0
        %1495 = vmatprep.subr.mxu0 0.0
        %v1496 = vand.u32 %v356, 4294901760
        %1497 = vmatpush1.msra.mxu0 %v1496
        %1498 = vmatprep.subr.mxu0 0.0
        %1499 = vmatpush1.msra.mxu0 0.0
        %1500 = vmatprep.subr.mxu0 0.0
        %1501 = vmatpush1.msra.mxu0 0.0
        %1502 = vmatprep.subr.mxu0 0.0
        %1503 = vmatpush1.msra.mxu0 0.0
        %1504 = vmatprep.subr.mxu0 0.0
        %1505 = vmatpush1.msra.mxu0 0.0
        %1506 = vmatprep.subr.mxu0 0.0
        %1507 = vmatpush1.msra.mxu0 0.0
        %1508 = vmatprep.subr.mxu0 0.0
        %1509 = vmatpush1.msra.mxu0 0.0
        %1510 = vmatprep.subr.mxu0 0.0
        %1511 = vmatpush1.msra.mxu0 0.0
        %1512 = vmatprep.subr.mxu0 0.0
        %1513 = vmatpush1.msra.mxu0 0.0
        %1514 = vmatprep.subr.mxu0 0.0
        %1515 = vmatpush1.msra.mxu0 0.0
        %1516 = vmatprep.subr.mxu0 0.0
        %1517 = vmatpush1.msra.mxu0 0.0
        %1518 = vmatprep.subr.mxu0 0.0
        %1519 = vmatpush1.msra.mxu0 0.0
        %1520 = vmatprep.subr.mxu0 0.0
        %1521 = vmatpush1.msra.mxu0 0.0
        %1522 = vmatprep.subr.mxu0 0.0
        %1523 = vmatpush1.msra.mxu0 0.0
        %1524 = vmatprep.subr.mxu0 0.0
        %1525 = vmatpush1.msra.mxu0 0.0
        %1526 = vmatprep.subr.mxu0 0.0
        %1527 = vmatpush1.msra.mxu0 0.0
        %1528 = vmatprep.subr.mxu0 0.0
        %1529 = vmatpush1.msra.mxu0 0.0
        %1530 = vmatprep.subr.mxu0 0.0
        %1531 = vmatpush1.msra.mxu0 0.0
        %1532 = vmatprep.subr.mxu0 0.0
        %1533 = vmatpush1.msra.mxu0 0.0
        %1534 = vmatprep.subr.mxu0 0.0
        %1535 = vmatpush1.msra.mxu0 0.0
        %1536 = vmatprep.subr.mxu0 0.0
        %1537 = vmatpush1.msra.mxu0 0.0
        %1538 = vmatprep.subr.mxu0 0.0
        %1539 = vmatpush1.msra.mxu0 0.0
        %1540 = vmatprep.subr.mxu0 0.0
        %1541 = vmatpush1.msra.mxu0 0.0
        %1542 = vmatprep.subr.mxu0 0.0
        %1543 = vmatpush1.msra.mxu0 0.0
        %1544 = vmatprep.subr.mxu0 0.0
        %1545 = vmatpush1.msra.mxu0 0.0
        %1546 = vmatprep.subr.mxu0 0.0
        %1547 = vmatpush1.msra.mxu0 0.0
        %1548 = vmatprep.subr.mxu0 0.0
        %1549 = vmatpush1.msra.mxu0 0.0
        %1550 = vmatprep.subr.mxu0 0.0
        %1551 = vmatpush1.msra.mxu0 0.0
        %1552 = vmatprep.subr.mxu0 0.0
        %1553 = vmatpush1.msra.mxu0 0.0
        %1554 = vmatprep.subr.mxu0 0.0
        %1555 = vmatpush1.msra.mxu0 0.0
        %1556 = vmatprep.subr.mxu0 0.0
        %1557 = vmatpush1.msra.mxu0 0.0
        %1558 = vmatprep.subr.mxu0 0.0
        %1559 = vmatpush1.msra.mxu0 0.0
        %1560 = vmatprep.mubr.f32.mxu0 0.0
        %v1561 = vand.u32 %v1267, 4294901760
        %v1562 = vsub.f32 %v1267, %v1561
        %v1563 = vand.u32 %v1562, 4294901760
        %1564 = vmatmul.mubr.f32.gmra.mrb[0].mxu0 %v1563
        %v1565 = vpop.f32.mrb[0].mxu0
        %v1566 = vadd.f32 %v1492, %v1565
        %v1567 = vpop.f32.mrb[0].mxu0
        %1568 = vdwg.mxu0
        %1569 = vmatprep.subr.mxu0 0.0
        %v1570 = vand.u32 %v356, 4294901760
        %v1571 = vsub.f32 %v356, %v1570
        %v1572 = vand.u32 %v1571, 4294901760
        %1573 = vmatpush1.msra.mxu0 %v1572
        %1574 = vmatprep.subr.mxu0 0.0
        %1575 = vmatpush1.msra.mxu0 0.0
        %1576 = vmatprep.subr.mxu0 0.0
        %1577 = vmatpush1.msra.mxu0 0.0
        %1578 = vmatprep.subr.mxu0 0.0
        %1579 = vmatpush1.msra.mxu0 0.0
        %1580 = vmatprep.subr.mxu0 0.0
        %1581 = vmatpush1.msra.mxu0 0.0
        %1582 = vmatprep.subr.mxu0 0.0
        %1583 = vmatpush1.msra.mxu0 0.0
        %1584 = vmatprep.subr.mxu0 0.0
        %1585 = vmatpush1.msra.mxu0 0.0
        %1586 = vmatprep.subr.mxu0 0.0
        %1587 = vmatpush1.msra.mxu0 0.0
        %1588 = vmatprep.subr.mxu0 0.0
        %1589 = vmatpush1.msra.mxu0 0.0
        %1590 = vmatprep.subr.mxu0 0.0
        %1591 = vmatpush1.msra.mxu0 0.0
        %1592 = vmatprep.subr.mxu0 0.0
        %1593 = vmatpush1.msra.mxu0 0.0
        %1594 = vmatprep.subr.mxu0 0.0
        %1595 = vmatpush1.msra.mxu0 0.0
        %1596 = vmatprep.subr.mxu0 0.0
        %1597 = vmatpush1.msra.mxu0 0.0
        %1598 = vmatprep.subr.mxu0 0.0
        %1599 = vmatpush1.msra.mxu0 0.0
        %1600 = vmatprep.subr.mxu0 0.0
        %1601 = vmatpush1.msra.mxu0 0.0
        %1602 = vmatprep.subr.mxu0 0.0
        %1603 = vmatpush1.msra.mxu0 0.0
        %1604 = vmatprep.subr.mxu0 0.0
        %1605 = vmatpush1.msra.mxu0 0.0
        %1606 = vmatprep.subr.mxu0 0.0
        %1607 = vmatpush1.msra.mxu0 0.0
        %1608 = vmatprep.subr.mxu0 0.0
        %1609 = vmatpush1.msra.mxu0 0.0
        %1610 = vmatprep.subr.mxu0 0.0
        %1611 = vmatpush1.msra.mxu0 0.0
        %1612 = vmatprep.subr.mxu0 0.0
        %1613 = vmatpush1.msra.mxu0 0.0
        %1614 = vmatprep.subr.mxu0 0.0
        %1615 = vmatpush1.msra.mxu0 0.0
        %1616 = vmatprep.subr.mxu0 0.0
        %1617 = vmatpush1.msra.mxu0 0.0
        %1618 = vmatprep.subr.mxu0 0.0
        %1619 = vmatpush1.msra.mxu0 0.0
        %1620 = vmatprep.subr.mxu0 0.0
        %1621 = vmatpush1.msra.mxu0 0.0
        %1622 = vmatprep.subr.mxu0 0.0
        %1623 = vmatpush1.msra.mxu0 0.0
        %1624 = vmatprep.subr.mxu0 0.0
        %1625 = vmatpush1.msra.mxu0 0.0
        %1626 = vmatprep.subr.mxu0 0.0
        %1627 = vmatpush1.msra.mxu0 0.0
        %1628 = vmatprep.subr.mxu0 0.0
        %1629 = vmatpush1.msra.mxu0 0.0
        %1630 = vmatprep.subr.mxu0 0.0
        %1631 = vmatpush1.msra.mxu0 0.0
        %1632 = vmatprep.subr.mxu0 0.0
        %1633 = vmatpush1.msra.mxu0 0.0
        %1634 = vmatprep.subr.mxu0 0.0
        %1635 = vmatpush1.msra.mxu0 0.0
        %1636 = vmatprep.mubr.f32.mxu0 0.0
        %v1637 = vand.u32 %v1267, 4294901760
        %1638 = vmatmul.mubr.f32.gmra.mrb[0].mxu0 %v1637
        %v1639 = vpop.f32.mrb[0].mxu0
        %v1640 = vadd.f32 %v1566, %v1639
        %v1641 = vpop.f32.mrb[0].mxu0
        %1642 = vdwg.mxu0
        %1643 = vmatprep.subr.mxu0 0.0
        %v1644 = vand.u32 %v356, 4294901760
        %1645 = vmatpush1.msra.mxu0 %v1644
        %1646 = vmatprep.subr.mxu0 0.0
        %1647 = vmatpush1.msra.mxu0 0.0
        %1648 = vmatprep.subr.mxu0 0.0
        %1649 = vmatpush1.msra.mxu0 0.0
        %1650 = vmatprep.subr.mxu0 0.0
        %1651 = vmatpush1.msra.mxu0 0.0
        %1652 = vmatprep.subr.mxu0 0.0
        %1653 = vmatpush1.msra.mxu0 0.0
        %1654 = vmatprep.subr.mxu0 0.0
        %1655 = vmatpush1.msra.mxu0 0.0
        %1656 = vmatprep.subr.mxu0 0.0
        %1657 = vmatpush1.msra.mxu0 0.0
        %1658 = vmatprep.subr.mxu0 0.0
        %1659 = vmatpush1.msra.mxu0 0.0
        %1660 = vmatprep.subr.mxu0 0.0
        %1661 = vmatpush1.msra.mxu0 0.0
        %1662 = vmatprep.subr.mxu0 0.0
        %1663 = vmatpush1.msra.mxu0 0.0
        %1664 = vmatprep.subr.mxu0 0.0
        %1665 = vmatpush1.msra.mxu0 0.0
        %1666 = vmatprep.subr.mxu0 0.0
        %1667 = vmatpush1.msra.mxu0 0.0
        %1668 = vmatprep.subr.mxu0 0.0
        %1669 = vmatpush1.msra.mxu0 0.0
        %1670 = vmatprep.subr.mxu0 0.0
        %1671 = vmatpush1.msra.mxu0 0.0
        %1672 = vmatprep.subr.mxu0 0.0
        %1673 = vmatpush1.msra.mxu0 0.0
        %1674 = vmatprep.subr.mxu0 0.0
        %1675 = vmatpush1.msra.mxu0 0.0
        %1676 = vmatprep.subr.mxu0 0.0
        %1677 = vmatpush1.msra.mxu0 0.0
        %1678 = vmatprep.subr.mxu0 0.0
        %1679 = vmatpush1.msra.mxu0 0.0
        %1680 = vmatprep.subr.mxu0 0.0
        %1681 = vmatpush1.msra.mxu0 0.0
        %1682 = vmatprep.subr.mxu0 0.0
        %1683 = vmatpush1.msra.mxu0 0.0
        %1684 = vmatprep.subr.mxu0 0.0
        %1685 = vmatpush1.msra.mxu0 0.0
        %1686 = vmatprep.subr.mxu0 0.0
        %1687 = vmatpush1.msra.mxu0 0.0
        %1688 = vmatprep.subr.mxu0 0.0
        %1689 = vmatpush1.msra.mxu0 0.0
        %1690 = vmatprep.subr.mxu0 0.0
        %1691 = vmatpush1.msra.mxu0 0.0
        %1692 = vmatprep.subr.mxu0 0.0
        %1693 = vmatpush1.msra.mxu0 0.0
        %1694 = vmatprep.subr.mxu0 0.0
        %1695 = vmatpush1.msra.mxu0 0.0
        %1696 = vmatprep.subr.mxu0 0.0
        %1697 = vmatpush1.msra.mxu0 0.0
        %1698 = vmatprep.subr.mxu0 0.0
        %1699 = vmatpush1.msra.mxu0 0.0
        %1700 = vmatprep.subr.mxu0 0.0
        %1701 = vmatpush1.msra.mxu0 0.0
        %1702 = vmatprep.subr.mxu0 0.0
        %1703 = vmatpush1.msra.mxu0 0.0
        %1704 = vmatprep.subr.mxu0 0.0
        %1705 = vmatpush1.msra.mxu0 0.0
        %1706 = vmatprep.subr.mxu0 0.0
        %1707 = vmatpush1.msra.mxu0 0.0
        %1708 = vmatprep.mubr.f32.mxu0 0.0
        %v1709 = vand.u32 %v1267, 4294901760
        %1710 = vmatmul.mubr.f32.gmra.mrb[0].mxu0 %v1709
        %v1711 = vpop.f32.mrb[0].mxu0
        %v1712 = vadd.f32 %v1640, %v1711
        %v1713 = vpop.f32.mrb[0].mxu0
        %1714 = vdwg.mxu0
        %v1716 = vsel %vm360, %v353, 0
        %1718 = vmatprep.subr.mxu0 0.0
        %v1719 = vand.u32 %v357, 4294901760
        %1720 = vmatpush1.msra.mxu0 %v1719
        %1721 = vmatprep.subr.mxu0 0.0
        %1722 = vmatpush1.msra.mxu0 0.0
        %1723 = vmatprep.subr.mxu0 0.0
        %1724 = vmatpush1.msra.mxu0 0.0
        %1725 = vmatprep.subr.mxu0 0.0
        %1726 = vmatpush1.msra.mxu0 0.0
        %1727 = vmatprep.subr.mxu0 0.0
        %1728 = vmatpush1.msra.mxu0 0.0
        %1729 = vmatprep.subr.mxu0 0.0
        %1730 = vmatpush1.msra.mxu0 0.0
        %1731 = vmatprep.subr.mxu0 0.0
        %1732 = vmatpush1.msra.mxu0 0.0
        %1733 = vmatprep.subr.mxu0 0.0
        %1734 = vmatpush1.msra.mxu0 0.0
        %1735 = vmatprep.subr.mxu0 0.0
        %1736 = vmatpush1.msra.mxu0 0.0
        %1737 = vmatprep.subr.mxu0 0.0
        %1738 = vmatpush1.msra.mxu0 0.0
        %1739 = vmatprep.subr.mxu0 0.0
        %1740 = vmatpush1.msra.mxu0 0.0
        %1741 = vmatprep.subr.mxu0 0.0
        %1742 = vmatpush1.msra.mxu0 0.0
        %1743 = vmatprep.subr.mxu0 0.0
        %1744 = vmatpush1.msra.mxu0 0.0
        %1745 = vmatprep.subr.mxu0 0.0
        %1746 = vmatpush1.msra.mxu0 0.0
        %1747 = vmatprep.subr.mxu0 0.0
        %1748 = vmatpush1.msra.mxu0 0.0
        %1749 = vmatprep.subr.mxu0 0.0
        %1750 = vmatpush1.msra.mxu0 0.0
        %1751 = vmatprep.subr.mxu0 0.0
        %1752 = vmatpush1.msra.mxu0 0.0
        %1753 = vmatprep.subr.mxu0 0.0
        %1754 = vmatpush1.msra.mxu0 0.0
        %1755 = vmatprep.subr.mxu0 0.0
        %1756 = vmatpush1.msra.mxu0 0.0
        %1757 = vmatprep.subr.mxu0 0.0
        %1758 = vmatpush1.msra.mxu0 0.0
        %1759 = vmatprep.subr.mxu0 0.0
        %1760 = vmatpush1.msra.mxu0 0.0
        %1761 = vmatprep.subr.mxu0 0.0
        %1762 = vmatpush1.msra.mxu0 0.0
        %1763 = vmatprep.subr.mxu0 0.0
        %1764 = vmatpush1.msra.mxu0 0.0
        %1765 = vmatprep.subr.mxu0 0.0
        %1766 = vmatpush1.msra.mxu0 0.0
        %1767 = vmatprep.subr.mxu0 0.0
        %1768 = vmatpush1.msra.mxu0 0.0
        %1769 = vmatprep.subr.mxu0 0.0
        %1770 = vmatpush1.msra.mxu0 0.0
        %1771 = vmatprep.subr.mxu0 0.0
        %1772 = vmatpush1.msra.mxu0 0.0
        %1773 = vmatprep.subr.mxu0 0.0
        %1774 = vmatpush1.msra.mxu0 0.0
        %1775 = vmatprep.subr.mxu0 0.0
        %1776 = vmatpush1.msra.mxu0 0.0
        %1777 = vmatprep.subr.mxu0 0.0
        %1778 = vmatpush1.msra.mxu0 0.0
        %1779 = vmatprep.subr.mxu0 0.0
        %1780 = vmatpush1.msra.mxu0 0.0
        %1781 = vmatprep.subr.mxu0 0.0
        %1782 = vmatpush1.msra.mxu0 0.0
        %1783 = vmatprep.mubr.f32.mxu0 0.0
        %v1784 = vand.u32 %v1716, 4294901760
        %v1785 = vsub.f32 %v1716, %v1784
        %v1786 = vand.u32 %v1785, 4294901760
        %v1787 = vsub.f32 %v1785, %v1786
        %v1788 = vand.u32 %v1787, 4294901760
        %1789 = vmatmul.mubr.f32.gmra.mrb[0].mxu0 %v1788
        %v1790 = vpop.f32.mrb[0].mxu0
        %v1791 = vadd.f32 0.0, %v1790
        %v1792 = vpop.f32.mrb[0].mxu0
        %1793 = vdwg.mxu0
        %1794 = vmatprep.subr.mxu0 0.0
        %v1795 = vand.u32 %v357, 4294901760
        %v1796 = vsub.f32 %v357, %v1795
        %v1797 = vand.u32 %v1796, 4294901760
        %v1798 = vsub.f32 %v1796, %v1797
        %v1799 = vand.u32 %v1798, 4294901760
        %1800 = vmatpush1.msra.mxu0 %v1799
        %1801 = vmatprep.subr.mxu0 0.0
        %1802 = vmatpush1.msra.mxu0 0.0
        %1803 = vmatprep.subr.mxu0 0.0
        %1804 = vmatpush1.msra.mxu0 0.0
        %1805 = vmatprep.subr.mxu0 0.0
        %1806 = vmatpush1.msra.mxu0 0.0
        %1807 = vmatprep.subr.mxu0 0.0
        %1808 = vmatpush1.msra.mxu0 0.0
        %1809 = vmatprep.subr.mxu0 0.0
        %1810 = vmatpush1.msra.mxu0 0.0
        %1811 = vmatprep.subr.mxu0 0.0
        %1812 = vmatpush1.msra.mxu0 0.0
        %1813 = vmatprep.subr.mxu0 0.0
        %1814 = vmatpush1.msra.mxu0 0.0
        %1815 = vmatprep.subr.mxu0 0.0
        %1816 = vmatpush1.msra.mxu0 0.0
        %1817 = vmatprep.subr.mxu0 0.0
        %1818 = vmatpush1.msra.mxu0 0.0
        %1819 = vmatprep.subr.mxu0 0.0
        %1820 = vmatpush1.msra.mxu0 0.0
        %1821 = vmatprep.subr.mxu0 0.0
        %1822 = vmatpush1.msra.mxu0 0.0
        %1823 = vmatprep.subr.mxu0 0.0
        %1824 = vmatpush1.msra.mxu0 0.0
        %1825 = vmatprep.subr.mxu0 0.0
        %1826 = vmatpush1.msra.mxu0 0.0
        %1827 = vmatprep.subr.mxu0 0.0
        %1828 = vmatpush1.msra.mxu0 0.0
        %1829 = vmatprep.subr.mxu0 0.0
        %1830 = vmatpush1.msra.mxu0 0.0
        %1831 = vmatprep.subr.mxu0 0.0
        %1832 = vmatpush1.msra.mxu0 0.0
        %1833 = vmatprep.subr.mxu0 0.0
        %1834 = vmatpush1.msra.mxu0 0.0
        %1835 = vmatprep.subr.mxu0 0.0
        %1836 = vmatpush1.msra.mxu0 0.0
        %1837 = vmatprep.subr.mxu0 0.0
        %1838 = vmatpush1.msra.mxu0 0.0
        %1839 = vmatprep.subr.mxu0 0.0
        %1840 = vmatpush1.msra.mxu0 0.0
        %1841 = vmatprep.subr.mxu0 0.0
        %1842 = vmatpush1.msra.mxu0 0.0
        %1843 = vmatprep.subr.mxu0 0.0
        %1844 = vmatpush1.msra.mxu0 0.0
        %1845 = vmatprep.subr.mxu0 0.0
        %1846 = vmatpush1.msra.mxu0 0.0
        %1847 = vmatprep.subr.mxu0 0.0
        %1848 = vmatpush1.msra.mxu0 0.0
        %1849 = vmatprep.subr.mxu0 0.0
        %1850 = vmatpush1.msra.mxu0 0.0
        %1851 = vmatprep.subr.mxu0 0.0
        %1852 = vmatpush1.msra.mxu0 0.0
        %1853 = vmatprep.subr.mxu0 0.0
        %1854 = vmatpush1.msra.mxu0 0.0
        %1855 = vmatprep.subr.mxu0 0.0
        %1856 = vmatpush1.msra.mxu0 0.0
        %1857 = vmatprep.subr.mxu0 0.0
        %1858 = vmatpush1.msra.mxu0 0.0
        %1859 = vmatprep.subr.mxu0 0.0
        %1860 = vmatpush1.msra.mxu0 0.0
        %1861 = vmatprep.subr.mxu0 0.0
        %1862 = vmatpush1.msra.mxu0 0.0
        %1863 = vmatprep.mubr.f32.mxu0 0.0
        %v1864 = vand.u32 %v1716, 4294901760
        %1865 = vmatmul.mubr.f32.gmra.mrb[0].mxu0 %v1864
        %v1866 = vpop.f32.mrb[0].mxu0
        %v1867 = vadd.f32 %v1791, %v1866
        %v1868 = vpop.f32.mrb[0].mxu0
        %1869 = vdwg.mxu0
        %1870 = vmatprep.subr.mxu0 0.0
        %v1871 = vand.u32 %v357, 4294901760
        %v1872 = vsub.f32 %v357, %v1871
        %1873 = vmatpush1.msra.mxu0 %v1872
        %1874 = vmatprep.subr.mxu0 0.0
        %1875 = vmatpush1.msra.mxu0 0.0
        %1876 = vmatprep.subr.mxu0 0.0
        %1877 = vmatpush1.msra.mxu0 0.0
        %1878 = vmatprep.subr.mxu0 0.0
        %1879 = vmatpush1.msra.mxu0 0.0
        %1880 = vmatprep.subr.mxu0 0.0
        %1881 = vmatpush1.msra.mxu0 0.0
        %1882 = vmatprep.subr.mxu0 0.0
        %1883 = vmatpush1.msra.mxu0 0.0
        %1884 = vmatprep.subr.mxu0 0.0
        %1885 = vmatpush1.msra.mxu0 0.0
        %1886 = vmatprep.subr.mxu0 0.0
        %1887 = vmatpush1.msra.mxu0 0.0
        %1888 = vmatprep.subr.mxu0 0.0
        %1889 = vmatpush1.msra.mxu0 0.0
        %1890 = vmatprep.subr.mxu0 0.0
        %1891 = vmatpush1.msra.mxu0 0.0
        %1892 = vmatprep.subr.mxu0 0.0
        %1893 = vmatpush1.msra.mxu0 0.0
        %1894 = vmatprep.subr.mxu0 0.0
        %1895 = vmatpush1.msra.mxu0 0.0
        %1896 = vmatprep.subr.mxu0 0.0
        %1897 = vmatpush1.msra.mxu0 0.0
        %1898 = vmatprep.subr.mxu0 0.0
        %1899 = vmatpush1.msra.mxu0 0.0
        %1900 = vmatprep.subr.mxu0 0.0
        %1901 = vmatpush1.msra.mxu0 0.0
        %1902 = vmatprep.subr.mxu0 0.0
        %1903 = vmatpush1.msra.mxu0 0.0
        %1904 = vmatprep.subr.mxu0 0.0
        %1905 = vmatpush1.msra.mxu0 0.0
        %1906 = vmatprep.subr.mxu0 0.0
        %1907 = vmatpush1.msra.mxu0 0.0
        %1908 = vmatprep.subr.mxu0 0.0
        %1909 = vmatpush1.msra.mxu0 0.0
        %1910 = vmatprep.subr.mxu0 0.0
        %1911 = vmatpush1.msra.mxu0 0.0
        %1912 = vmatprep.subr.mxu0 0.0
        %1913 = vmatpush1.msra.mxu0 0.0
        %1914 = vmatprep.subr.mxu0 0.0
        %1915 = vmatpush1.msra.mxu0 0.0
        %1916 = vmatprep.subr.mxu0 0.0
        %1917 = vmatpush1.msra.mxu0 0.0
        %1918 = vmatprep.subr.mxu0 0.0
        %1919 = vmatpush1.msra.mxu0 0.0
        %1920 = vmatprep.subr.mxu0 0.0
        %1921 = vmatpush1.msra.mxu0 0.0
        %1922 = vmatprep.subr.mxu0 0.0
        %1923 = vmatpush1.msra.mxu0 0.0
        %1924 = vmatprep.subr.mxu0 0.0
        %1925 = vmatpush1.msra.mxu0 0.0
        %1926 = vmatprep.subr.mxu0 0.0
        %1927 = vmatpush1.msra.mxu0 0.0
        %1928 = vmatprep.subr.mxu0 0.0
        %1929 = vmatpush1.msra.mxu0 0.0
        %1930 = vmatprep.subr.mxu0 0.0
        %1931 = vmatpush1.msra.mxu0 0.0
        %1932 = vmatprep.subr.mxu0 0.0
        %1933 = vmatpush1.msra.mxu0 0.0
        %1934 = vmatprep.subr.mxu0 0.0
        %1935 = vmatpush1.msra.mxu0 0.0
        %1936 = vmatprep.mubr.f32.mxu0 0.0
        %v1937 = vand.u32 %v1716, 4294901760
        %v1938 = vsub.f32 %v1716, %v1937
        %1939 = vmatmul.mubr.f32.gmra.mrb[0].mxu0 %v1938
        %v1940 = vpop.f32.mrb[0].mxu0
        %v1941 = vadd.f32 %v1867, %v1940
        %v1942 = vpop.f32.mrb[0].mxu0
        %1943 = vdwg.mxu0
        %1944 = vmatprep.subr.mxu0 0.0
        %v1945 = vand.u32 %v357, 4294901760
        %1946 = vmatpush1.msra.mxu0 %v1945
        %1947 = vmatprep.subr.mxu0 0.0
        %1948 = vmatpush1.msra.mxu0 0.0
        %1949 = vmatprep.subr.mxu0 0.0
        %1950 = vmatpush1.msra.mxu0 0.0
        %1951 = vmatprep.subr.mxu0 0.0
        %1952 = vmatpush1.msra.mxu0 0.0
        %1953 = vmatprep.subr.mxu0 0.0
        %1954 = vmatpush1.msra.mxu0 0.0
        %1955 = vmatprep.subr.mxu0 0.0
        %1956 = vmatpush1.msra.mxu0 0.0
        %1957 = vmatprep.subr.mxu0 0.0
        %1958 = vmatpush1.msra.mxu0 0.0
        %1959 = vmatprep.subr.mxu0 0.0
        %1960 = vmatpush1.msra.mxu0 0.0
        %1961 = vmatprep.subr.mxu0 0.0
        %1962 = vmatpush1.msra.mxu0 0.0
        %1963 = vmatprep.subr.mxu0 0.0
        %1964 = vmatpush1.msra.mxu0 0.0
        %1965 = vmatprep.subr.mxu0 0.0
        %1966 = vmatpush1.msra.mxu0 0.0
        %1967 = vmatprep.subr.mxu0 0.0
        %1968 = vmatpush1.msra.mxu0 0.0
        %1969 = vmatprep.subr.mxu0 0.0
        %1970 = vmatpush1.msra.mxu0 0.0
        %1971 = vmatprep.subr.mxu0 0.0
        %1972 = vmatpush1.msra.mxu0 0.0
        %1973 = vmatprep.subr.mxu0 0.0
        %1974 = vmatpush1.msra.mxu0 0.0
        %1975 = vmatprep.subr.mxu0 0.0
        %1976 = vmatpush1.msra.mxu0 0.0
        %1977 = vmatprep.subr.mxu0 0.0
        %1978 = vmatpush1.msra.mxu0 0.0
        %1979 = vmatprep.subr.mxu0 0.0
        %1980 = vmatpush1.msra.mxu0 0.0
        %1981 = vmatprep.subr.mxu0 0.0
        %1982 = vmatpush1.msra.mxu0 0.0
        %1983 = vmatprep.subr.mxu0 0.0
        %1984 = vmatpush1.msra.mxu0 0.0
        %1985 = vmatprep.subr.mxu0 0.0
        %1986 = vmatpush1.msra.mxu0 0.0
        %1987 = vmatprep.subr.mxu0 0.0
        %1988 = vmatpush1.msra.mxu0 0.0
        %1989 = vmatprep.subr.mxu0 0.0
        %1990 = vmatpush1.msra.mxu0 0.0
        %1991 = vmatprep.subr.mxu0 0.0
        %1992 = vmatpush1.msra.mxu0 0.0
        %1993 = vmatprep.subr.mxu0 0.0
        %1994 = vmatpush1.msra.mxu0 0.0
        %1995 = vmatprep.subr.mxu0 0.0
        %1996 = vmatpush1.msra.mxu0 0.0
        %1997 = vmatprep.subr.mxu0 0.0
        %1998 = vmatpush1.msra.mxu0 0.0
        %1999 = vmatprep.subr.mxu0 0.0
        %2000 = vmatpush1.msra.mxu0 0.0
        %2001 = vmatprep.subr.mxu0 0.0
        %2002 = vmatpush1.msra.mxu0 0.0
        %2003 = vmatprep.subr.mxu0 0.0
        %2004 = vmatpush1.msra.mxu0 0.0
        %2005 = vmatprep.subr.mxu0 0.0
        %2006 = vmatpush1.msra.mxu0 0.0
        %2007 = vmatprep.subr.mxu0 0.0
        %2008 = vmatpush1.msra.mxu0 0.0
        %2009 = vmatprep.mubr.f32.mxu0 0.0
        %v2010 = vand.u32 %v1716, 4294901760
        %v2011 = vsub.f32 %v1716, %v2010
        %v2012 = vand.u32 %v2011, 4294901760
        %2013 = vmatmul.mubr.f32.gmra.mrb[0].mxu0 %v2012
        %v2014 = vpop.f32.mrb[0].mxu0
        %v2015 = vadd.f32 %v1941, %v2014
        %v2016 = vpop.f32.mrb[0].mxu0
        %2017 = vdwg.mxu0
        %2018 = vmatprep.subr.mxu0 0.0
        %v2019 = vand.u32 %v357, 4294901760
        %v2020 = vsub.f32 %v357, %v2019
        %v2021 = vand.u32 %v2020, 4294901760
        %2022 = vmatpush1.msra.mxu0 %v2021
        %2023 = vmatprep.subr.mxu0 0.0
        %2024 = vmatpush1.msra.mxu0 0.0
        %2025 = vmatprep.subr.mxu0 0.0
        %2026 = vmatpush1.msra.mxu0 0.0
        %2027 = vmatprep.subr.mxu0 0.0
        %2028 = vmatpush1.msra.mxu0 0.0
        %2029 = vmatprep.subr.mxu0 0.0
        %2030 = vmatpush1.msra.mxu0 0.0
        %2031 = vmatprep.subr.mxu0 0.0
        %2032 = vmatpush1.msra.mxu0 0.0
        %2033 = vmatprep.subr.mxu0 0.0
        %2034 = vmatpush1.msra.mxu0 0.0
        %2035 = vmatprep.subr.mxu0 0.0
        %2036 = vmatpush1.msra.mxu0 0.0
        %2037 = vmatprep.subr.mxu0 0.0
        %2038 = vmatpush1.msra.mxu0 0.0
        %2039 = vmatprep.subr.mxu0 0.0
        %2040 = vmatpush1.msra.mxu0 0.0
        %2041 = vmatprep.subr.mxu0 0.0
        %2042 = vmatpush1.msra.mxu0 0.0
        %2043 = vmatprep.subr.mxu0 0.0
        %2044 = vmatpush1.msra.mxu0 0.0
        %2045 = vmatprep.subr.mxu0 0.0
        %2046 = vmatpush1.msra.mxu0 0.0
        %2047 = vmatprep.subr.mxu0 0.0
        %2048 = vmatpush1.msra.mxu0 0.0
        %2049 = vmatprep.subr.mxu0 0.0
        %2050 = vmatpush1.msra.mxu0 0.0
        %2051 = vmatprep.subr.mxu0 0.0
        %2052 = vmatpush1.msra.mxu0 0.0
        %2053 = vmatprep.subr.mxu0 0.0
        %2054 = vmatpush1.msra.mxu0 0.0
        %2055 = vmatprep.subr.mxu0 0.0
        %2056 = vmatpush1.msra.mxu0 0.0
        %2057 = vmatprep.subr.mxu0 0.0
        %2058 = vmatpush1.msra.mxu0 0.0
        %2059 = vmatprep.subr.mxu0 0.0
        %2060 = vmatpush1.msra.mxu0 0.0
        %2061 = vmatprep.subr.mxu0 0.0
        %2062 = vmatpush1.msra.mxu0 0.0
        %2063 = vmatprep.subr.mxu0 0.0
        %2064 = vmatpush1.msra.mxu0 0.0
        %2065 = vmatprep.subr.mxu0 0.0
        %2066 = vmatpush1.msra.mxu0 0.0
        %2067 = vmatprep.subr.mxu0 0.0
        %2068 = vmatpush1.msra.mxu0 0.0
        %2069 = vmatprep.subr.mxu0 0.0
        %2070 = vmatpush1.msra.mxu0 0.0
        %2071 = vmatprep.subr.mxu0 0.0
        %2072 = vmatpush1.msra.mxu0 0.0
        %2073 = vmatprep.subr.mxu0 0.0
        %2074 = vmatpush1.msra.mxu0 0.0
        %2075 = vmatprep.subr.mxu0 0.0
        %2076 = vmatpush1.msra.mxu0 0.0
        %2077 = vmatprep.subr.mxu0 0.0
        %2078 = vmatpush1.msra.mxu0 0.0
        %2079 = vmatprep.subr.mxu0 0.0
        %2080 = vmatpush1.msra.mxu0 0.0
        %2081 = vmatprep.subr.mxu0 0.0
        %2082 = vmatpush1.msra.mxu0 0.0
        %2083 = vmatprep.subr.mxu0 0.0
        %2084 = vmatpush1.msra.mxu0 0.0
        %2085 = vmatprep.mubr.f32.mxu0 0.0
        %v2086 = vand.u32 %v1716, 4294901760
        %2087 = vmatmul.mubr.f32.gmra.mrb[0].mxu0 %v2086
        %v2088 = vpop.f32.mrb[0].mxu0
        %v2089 = vadd.f32 %v2015, %v2088
        %v2090 = vpop.f32.mrb[0].mxu0
        %2091 = vdwg.mxu0
        %2092 = vmatprep.subr.mxu0 0.0
        %v2093 = vand.u32 %v357, 4294901760
        %2094 = vmatpush1.msra.mxu0 %v2093
        %2095 = vmatprep.subr.mxu0 0.0
        %2096 = vmatpush1.msra.mxu0 0.0
        %2097 = vmatprep.subr.mxu0 0.0
        %2098 = vmatpush1.msra.mxu0 0.0
        %2099 = vmatprep.subr.mxu0 0.0
        %2100 = vmatpush1.msra.mxu0 0.0
        %2101 = vmatprep.subr.mxu0 0.0
        %2102 = vmatpush1.msra.mxu0 0.0
        %2103 = vmatprep.subr.mxu0 0.0
        %2104 = vmatpush1.msra.mxu0 0.0
        %2105 = vmatprep.subr.mxu0 0.0
        %2106 = vmatpush1.msra.mxu0 0.0
        %2107 = vmatprep.subr.mxu0 0.0
        %2108 = vmatpush1.msra.mxu0 0.0
        %2109 = vmatprep.subr.mxu0 0.0
        %2110 = vmatpush1.msra.mxu0 0.0
        %2111 = vmatprep.subr.mxu0 0.0
        %2112 = vmatpush1.msra.mxu0 0.0
        %2113 = vmatprep.subr.mxu0 0.0
        %2114 = vmatpush1.msra.mxu0 0.0
        %2115 = vmatprep.subr.mxu0 0.0
        %2116 = vmatpush1.msra.mxu0 0.0
        %2117 = vmatprep.subr.mxu0 0.0
        %2118 = vmatpush1.msra.mxu0 0.0
        %2119 = vmatprep.subr.mxu0 0.0
        %2120 = vmatpush1.msra.mxu0 0.0
        %2121 = vmatprep.subr.mxu0 0.0
        %2122 = vmatpush1.msra.mxu0 0.0
        %2123 = vmatprep.subr.mxu0 0.0
        %2124 = vmatpush1.msra.mxu0 0.0
        %2125 = vmatprep.subr.mxu0 0.0
        %2126 = vmatpush1.msra.mxu0 0.0
        %2127 = vmatprep.subr.mxu0 0.0
        %2128 = vmatpush1.msra.mxu0 0.0
        %2129 = vmatprep.subr.mxu0 0.0
        %2130 = vmatpush1.msra.mxu0 0.0
        %2131 = vmatprep.subr.mxu0 0.0
        %2132 = vmatpush1.msra.mxu0 0.0
        %2133 = vmatprep.subr.mxu0 0.0
        %2134 = vmatpush1.msra.mxu0 0.0
        %2135 = vmatprep.subr.mxu0 0.0
        %2136 = vmatpush1.msra.mxu0 0.0
        %2137 = vmatprep.subr.mxu0 0.0
        %2138 = vmatpush1.msra.mxu0 0.0
        %2139 = vmatprep.subr.mxu0 0.0
        %2140 = vmatpush1.msra.mxu0 0.0
        %2141 = vmatprep.subr.mxu0 0.0
        %2142 = vmatpush1.msra.mxu0 0.0
        %2143 = vmatprep.subr.mxu0 0.0
        %2144 = vmatpush1.msra.mxu0 0.0
        %2145 = vmatprep.subr.mxu0 0.0
        %2146 = vmatpush1.msra.mxu0 0.0
        %2147 = vmatprep.subr.mxu0 0.0
        %2148 = vmatpush1.msra.mxu0 0.0
        %2149 = vmatprep.subr.mxu0 0.0
        %2150 = vmatpush1.msra.mxu0 0.0
        %2151 = vmatprep.subr.mxu0 0.0
        %2152 = vmatpush1.msra.mxu0 0.0
        %2153 = vmatprep.subr.mxu0 0.0
        %2154 = vmatpush1.msra.mxu0 0.0
        %2155 = vmatprep.subr.mxu0 0.0
        %2156 = vmatpush1.msra.mxu0 0.0
        %2157 = vmatprep.mubr.f32.mxu0 0.0
        %v2158 = vand.u32 %v1716, 4294901760
        %2159 = vmatmul.mubr.f32.gmra.mrb[0].mxu0 %v2158
        %v2160 = vpop.f32.mrb[0].mxu0
        %v2161 = vadd.f32 %v2089, %v2160
        %v2162 = vpop.f32.mrb[0].mxu0
        %2163 = vdwg.mxu0
        %v2164 = vadd.f32 %v1264, %v1712
        %v2165 = vadd.f32 %v1265, %v2161
        %2166 = vst.msk [vmem:[#allocation3] sm:$0x1] %vm1261, %v2164
        %2167 = vst.msk [vmem:[#allocation3 + $0x1] sm:$0x1] %vm1261, %v2165
        // Predicated region
        $region57: #{tpu_custom_call.1} parent=39 // pred_check
          %p2168 = pneg %p341
        $region58: #{tpu_custom_call.1} parent=39 // pred_check_branch
          %2170 = sbr.rel (%p2168) target = $region60
        $region59: #{tpu_custom_call.1} parent=39 // pred_region
          %v2171 = vld [vmem:[#allocation2] sm:$0x1]
          %v2172 = vld [vmem:[#allocation2 + $0x1] sm:$0x1]
          %v2173 = vld [vmem:[#allocation3] sm:$0x1]
          %v2174 = vld [vmem:[#allocation3 + $0x1] sm:$0x1]
          %v2175 = vmul.f32 %v2171, %v2171
          %v2176 = vmul.f32 %v2172, %v2172
          %v2177 = vsel %vm1261, %v2175, 0.0
          %2178 = vadd.xlane.f32.xlu0 %v2177
          %v2179 = vpop.xlane.xlu0 %2178
          %v2180 = vsel %vm1261, %v2176, 0.0
          %2181 = vadd.xlane.f32.xlu0 %v2180
          %v2182 = vpop.xlane.xlu0 %2181
          %v2183 = vmax.f32 %v2179, 1e-18
          %v2184 = vmax.f32 %v2182, 1e-18
          %v2185 = vrsqrt.pop %v2183
          %v2186 = vrsqrt.pop %v2184
          %v2187 = vmul.f32 %v2171, %v2185
          %v2188 = vmul.f32 %v2172, %v2186
          %v2189 = vmul.f32 %v2173, %v2173
          %v2190 = vmul.f32 %v2174, %v2174
          %v2191 = vsel %vm1261, %v2189, 0.0
          %2192 = vadd.xlane.f32.xlu0 %v2191
          %v2193 = vpop.xlane.xlu0 %2192
          %v2194 = vsel %vm1261, %v2190, 0.0
          %2195 = vadd.xlane.f32.xlu0 %v2194
          %v2196 = vpop.xlane.xlu0 %2195
          %v2197 = vmax.f32 %v2193, 1e-18
          %v2198 = vmax.f32 %v2196, 1e-18
          %v2199 = vrsqrt.pop %v2197
          %v2200 = vrsqrt.pop %v2198
          %v2201 = vmul.f32 %v2173, %v2199
          %v2202 = vmul.f32 %v2174, %v2200
          %v2203 = vmul.f32 %v2187, %v2201
          %v2204 = vmul.f32 %v2188, %v2202
          %v2205 = vsel %vm1261, %v2203, 0.0
          %2206 = vadd.xlane.f32.xlu0 %v2205
          %v2207 = vpop.xlane.xlu0 %2206
          %v2208 = vsel %vm1261, %v2204, 0.0
          %2209 = vadd.xlane.f32.xlu0 %v2208
          %v2210 = vpop.xlane.xlu0 %2209
          %vm2211 = vcmask 1040384
          %v2212 = vsel %vm2211, %v2207, 0.0
          %v2213 = vsel %vm2211, %v2210, 0.0
          %v2214 = vadd.f32 %v2212, %v2213
          %v2215 = vmul.f32 %v2214, 0.5
          %s2216 = sld [smem:[#allocation4 + %s30]]
          %v2217 = vsub.f32 1.0, %v2215
          %v2218 = vstv %s2216
          %v2219 = vmul.f32 %v2218, %v2217
          %v2220 = vlaneseq
          %v2221 = vshrl.u32 %v2220, 7
          %v2222 = vsub.s32 0, %v2221
          %v2223 = vrot.slane %v2219, %v2222
          %2224 = vst [vmem:[%s334] sm:$0xff] %v2223
        $region60: #{tpu_custom_call.1} parent=39 // pred_fallthru
          _
        %s2225 = sand.u32 %s175, 1
        %s2226 = scalar_lea.sflag [#allocation6], %s2225
        %s2227 = sand.u32 %s175, 1
        %s2228 = smul.addr %s2227, 8
        %s2229 = scalar_lea.vmem [#allocation11], %s2228
        // Predicated region
        $region61: #{tpu_custom_call.1} parent=39 // pred_check
          %p2230 = pneg %p185
        $region62: #{tpu_custom_call.1} parent=39 // pred_check_branch
          %2232 = sbr.rel (%p2230) target = $region64
        $region63: #{tpu_custom_call.1} parent=39 // pred_region
          %s2234 = ssub.s32 128, 128
          %2235 = vsyncadd %s2226, %s2234
          %s2236 = smul.addr %s30, 128
          %s2237 = scalar_lea.hbm %s5, %s2236
          %s2239 = sshll.u32 %s2229, 4
          %s2240 = int_to_ptr.vmem [resolvable:$true] %s2239
          %2242 = dma.vmem_to_hbm [thread:$0]  %s2240, 128, %s2237, %s2226
        $region64: #{tpu_custom_call.1} parent=39 // pred_fallthru
          _
      $region40: #{tpu_custom_call.1} parent=5 // pred_fallthru
        _
      %p2243 = scmp.le.s32.totalorder 2, %s21
      // Predicated region
      $region65: #{tpu_custom_call.1} parent=5 // pred_check
        %p2244 = pneg %p2243
      $region66: #{tpu_custom_call.1} parent=5 // pred_check_branch
        %2246 = sbr.rel (%p2244) target = $region68
      $region67: #{tpu_custom_call.1} parent=5 // pred_region
        %s2247 = ssub.s32 %s21, 2
        // Predicated region
        $region69: #{tpu_custom_call.1} parent=67 // pred_check
          %p2248 = pneg %p191
        $region70: #{tpu_custom_call.1} parent=67 // pred_check_branch
          %2250 = sbr.rel (%p2248) target = $region72
        $region71: #{tpu_custom_call.1} parent=67 // pred_region
          %s2251 = sand.u32 %s176, 1
          %s2252 = scalar_lea.sflag [#allocation6], %s2251
          %s2253 = sand.u32 %s176, 1
          %s2254 = smul.addr %s2253, 8
          %s2255 = scalar_lea.vmem [#allocation11], %s2254
          %2256 = dma.done %s2252, 128
        $region72: #{tpu_custom_call.1} parent=67 // pred_fallthru
          _
      $region68: #{tpu_custom_call.1} parent=5 // pred_fallthru
        _
    $region6: #{tpu_custom_call.1} parent=1 // loop_footer
      %s25 = sadd.s32 1, %s21
    $region7: #{tpu_custom_call.1} parent=1 // loop_footer_branch
      %20 = sbr.rel target = $region3
    $region8: #{tpu_custom_call.1} parent=1 // loop_exit
      _
    %2257 = vsyncpa [#allocation5], 1
    %s2258 = scalar_lea.sflag [#allocation5], 1
    %2259 = vsyncpa %s2258, 1
    %2260 = vsyncpa [#allocation10], 1
    %s2261 = scalar_lea.sflag [#allocation10], 1
    %2262 = vsyncpa %s2261, 1
    %2263 = vsyncpa [#allocation6], 1
    %s2264 = scalar_lea.sflag [#allocation6], 1
    %2265 = vsyncpa %s2264, 1
    %2266 = vsyncpa [#allocation7], 1
    %s2267 = scalar_lea.sflag [#allocation7], 1
    %2268 = vsyncpa %s2267, 1

</llo_original>
